<compile_context>
chip_gen: v7x
topology: tpu7x:2x2x1
jax: 0.10.0
libtpu: 0.0.40
codegen_flags: <defaults>
</compile_context>

<pallas_src>
import math
import functools

import jax
import jax.numpy as jnp
from jax.experimental import pallas as pl
from jax.experimental.pallas import tpu as pltpu


def bert_attention_kernel(x_ref, mask_ref,
                          wq_ref, bq_ref, wk_ref, bk_ref, wv_ref, bv_ref,
                          wo_ref, bo_ref, gamma_ref, beta_ref,
                          out_ref,
                          k_sc, v_sc,
                          *, num_heads, head_dim, ln_eps):
    """Grid = (batch, query_tile). K/V scratch persists across query tiles."""
    qi = pl.program_id(1)
    S = x_ref.shape[1]
    tq = out_ref.shape[1]
    H = num_heads * head_dim

    # --- K / V projections: once per batch element, stored head-leading bf16 ---
    @pl.when(qi == 0)
    def _():
        xf = x_ref[0].astype(jnp.bfloat16)                               # (S, H)
        k = jnp.dot(xf, wk_ref[...], preferred_element_type=jnp.float32) + bk_ref[...]
        v = jnp.dot(xf, wv_ref[...], preferred_element_type=jnp.float32) + bv_ref[...]
        # K stored MXU-native / lane-dense as (nH, dH, S); V as (nH, S, dH).
        # Two-step transpose: leading-dim swap, then batched minor-dim swap.
        k3 = jnp.transpose(k.reshape(S, num_heads, head_dim), (1, 0, 2))  # (nH, S, dH)
        k_sc[...] = jnp.swapaxes(k3, 1, 2).astype(jnp.bfloat16)           # (nH, dH, S)
        v_sc[...] = jnp.transpose(v.reshape(S, num_heads, head_dim),
                                  (1, 0, 2)).astype(jnp.bfloat16)         # (nH, S, dH)

    # --- query tile sliced from the already-resident full-sequence block ------
    q_start = pl.multiple_of(qi * tq, tq)
    xq = x_ref[0, pl.ds(q_start, tq), :]                                  # (tq, H) f32
    mask = mask_ref[0]                                                    # (1, S)  f32

    # --- Q projection (scale already folded into Wq / bq) ---------------------
    q = jnp.dot(xq.astype(jnp.bfloat16), wq_ref[...],
                preferred_element_type=jnp.float32) + bq_ref[...]         # (tq, H)
    qh = jnp.transpose(q.reshape(tq, num_heads, head_dim),
                       (1, 0, 2)).astype(jnp.bfloat16)                    # (nH, tq, dH)

    # --- head-batched scaled dot-product attention -----------------------------
    scores = jnp.einsum('hqd,hds->hqs', qh, k_sc[...],
                        preferred_element_type=jnp.float32)               # (nH, tq, S)
    scores = scores + mask[None, :, :]                                    # broadcast

    scores = scores - jnp.max(scores, axis=-1, keepdims=True)             # stable softmax
    probs = jnp.exp(scores)
    probs = probs * pl.reciprocal(jnp.sum(probs, axis=-1, keepdims=True),
                                  approx=True)

    ctx = jnp.einsum('hqs,hsd->hqd', probs.astype(jnp.bfloat16), v_sc[...],
                     preferred_element_type=jnp.float32)                  # (nH, tq, dH)

    # --- output dense: single (tq,H) x (H,H) matmul + residual + LayerNorm ----
    ctx2d = jnp.transpose(ctx, (1, 0, 2)).reshape(tq, H).astype(jnp.bfloat16)  # (tq, H)
    attn_out = jnp.dot(ctx2d, wo_ref[...],
                       preferred_element_type=jnp.float32) + bo_ref[...]       # (tq, H)

    y = attn_out + xq                                                     # residual
    mu = jnp.mean(y, axis=-1, keepdims=True)
    var = jnp.mean((y - mu) * (y - mu), axis=-1, keepdims=True)
    y_norm = (y - mu) * jax.lax.rsqrt(var + ln_eps)
    out = y_norm * gamma_ref[...] + beta_ref[...]

    out_ref[0] = out.astype(out_ref.dtype)


def bert_attention(hidden_states, attention_mask, params,
                   *, num_heads, layer_norm_eps):
    B, S, H = hidden_states.shape
    head_dim = H // num_heads
    scale = 1.0 / math.sqrt(head_dim)

    # Query-tile size: full sequence for small S; otherwise 256, shrinking
    # toward 128 if the f32 (nH, tq, S) softmax working set gets large (v7x).
    if S <= 256:
        tq = S
    else:
        tq = 256
        while tq > 128 and 2 * num_heads * tq * S * 4 > (16 << 20):
            tq //= 2
    assert S % tq == 0, "sequence length must be a multiple of the query tile"
    n_qt = S // tq

    # bf16 MXU operands (one-time weight transforms); 1/sqrt(dH) folded into Q proj.
    wq = (params["wq"] * scale).astype(jnp.bfloat16)
    bq = params["bq"] * scale
    wk = params["wk"].astype(jnp.bfloat16)
    wv = params["wv"].astype(jnp.bfloat16)
    wo = params["wo"].astype(jnp.bfloat16)

    # VMEM limit: cap at 64 MiB but leave headroom on 64-MiB-per-TC parts (v7x).
    try:
        vmem_cap = int(pltpu.get_tpu_info().vmem_capacity_bytes)
    except Exception:
        vmem_cap = 128 << 20
    vmem_limit = min(64 << 20, (3 * vmem_cap) // 4)

    kernel = functools.partial(bert_attention_kernel,
                               num_heads=num_heads,
                               head_dim=head_dim,
                               ln_eps=layer_norm_eps)

    w2d = lambda: pl.BlockSpec((H, H), lambda b, i: (0, 0))
    vec = lambda: pl.BlockSpec((1, H), lambda b, i: (0, 0))

    return pl.pallas_call(
        kernel,
        out_shape=jax.ShapeDtypeStruct((B, S, H), hidden_states.dtype),
        grid_spec=pltpu.PrefetchScalarGridSpec(
            num_scalar_prefetch=0,
            grid=(B, n_qt),
            in_specs=[
                pl.BlockSpec((1, S, H), lambda b, i: (b, 0, 0)),    # x (full seq; tiles sliced in-kernel)
                pl.BlockSpec((1, 1, S), lambda b, i: (b, 0, 0)),    # attention mask
                w2d(), vec(),                                       # Wq (scaled), bq (scaled)
                w2d(), vec(),                                       # Wk, bk
                w2d(), vec(),                                       # Wv, bv
                w2d(), vec(),                                       # Wo, bo
                vec(), vec(),                                       # gamma, beta
            ],
            out_specs=pl.BlockSpec((1, tq, H), lambda b, i: (b, i, 0)),
            scratch_shapes=[
                pltpu.VMEM((num_heads, head_dim, S), jnp.bfloat16),  # K^T (nH, dH, S)
                pltpu.VMEM((num_heads, S, head_dim), jnp.bfloat16),  # V   (nH, S, dH)
            ],
        ),
        compiler_params=pltpu.CompilerParams(
            dimension_semantics=("parallel", "arbitrary"),
            vmem_limit_bytes=vmem_limit,
        ),
    )(hidden_states, attention_mask,
      wq, bq, wk, params["bk"], wv, params["bv"],
      wo, params["bo"], params["gamma"], params["beta"])


def reference_bert_attention(x, mask, params, *, num_heads, layer_norm_eps):
    """Pure-JAX f32 reference mirroring the PyTorch forward (eval mode)."""
    B, S, H = x.shape
    dH = H // num_heads
    scale = 1.0 / math.sqrt(dH)

    def proj(w, b):
        return x @ w + b  # (B, S, H)

    q = proj(params["wq"], params["bq"]).reshape(B, S, num_heads, dH)
    k = proj(params["wk"], params["bk"]).reshape(B, S, num_heads, dH)
    v = proj(params["wv"], params["bv"]).reshape(B, S, num_heads, dH)

    scores = jnp.einsum("bqhd,bkhd->bhqk", q, k) * scale
    scores = scores + mask[:, :, None, :]          # (B,1,S) -> (B,1,1,S) broadcast
    probs = jax.nn.softmax(scores, axis=-1)
    ctx = jnp.einsum("bhqk,bkhd->bqhd", probs, v).reshape(B, S, H)

    attn_out = ctx @ params["wo"] + params["bo"]
    y = attn_out + x
    mu = jnp.mean(y, axis=-1, keepdims=True)
    var = jnp.mean((y - mu) ** 2, axis=-1, keepdims=True)
    y_norm = (y - mu) / jnp.sqrt(var + layer_norm_eps)
    return y_norm * params["gamma"] + params["beta"]


if __name__ == "__main__":
    B, S, H = 2, 8, 32
    NUM_HEADS = 4
    LN_EPS = 1e-12

    key = jax.random.PRNGKey(0)
    keys = jax.random.split(key, 10)

    def lin(kw, fan_in, fan_out):
        # deterministic "xavier-ish" init; weight stored as [in, out]
        return jax.random.normal(kw, (fan_in, fan_out), jnp.float32) * (1.0 / math.sqrt(fan_in))

    params = {
        "wq": lin(keys[0], H, H), "bq": jax.random.normal(keys[1], (1, H), jnp.float32) * 0.02,
        "wk": lin(keys[2], H, H), "bk": jax.random.normal(keys[3], (1, H), jnp.float32) * 0.02,
        "wv": lin(keys[4], H, H), "bv": jax.random.normal(keys[5], (1, H), jnp.float32) * 0.02,
        "wo": lin(keys[6], H, H), "bo": jax.random.normal(keys[7], (1, H), jnp.float32) * 0.02,
        "gamma": jnp.ones((1, H), jnp.float32),
        "beta": jnp.zeros((1, H), jnp.float32),
    }

    hidden_states = jax.random.normal(keys[8], (B, S, H), jnp.float32)

    # additive attention mask (B, 1, S): batch 1 has its last key position masked
    mask = jnp.zeros((B, 1, S), jnp.float32)
    mask = mask.at[1, 0, S - 1].set(-1e9)

    out = bert_attention(hidden_states, mask, params,
                         num_heads=NUM_HEADS, layer_norm_eps=LN_EPS)
    out = jax.block_until_ready(out)

    ref = reference_bert_attention(hidden_states, mask, params,
                                   num_heads=NUM_HEADS, layer_norm_eps=LN_EPS)

    assert out.shape == (B, S, H)
    # bf16 MXU operands + approx reciprocal -> loosened tolerance vs f32 reference
    assert jnp.allclose(out, ref, atol=5e-2, rtol=5e-2), "mismatch vs JAX reference"

    print("KERNEL_OK")
</pallas_src>

<mosaic_0001>
module attributes {stable_mosaic.version = 11 : i64} {
  func.func @bert_attention_kernel(%arg0: i32, %arg1: i32, %arg2: memref<1x8x32xf32, #tpu.memory_space<vmem>>, %arg3: memref<1x1x8xf32, #tpu.memory_space<vmem>>, %arg4: memref<32x32xbf16, #tpu.memory_space<vmem>>, %arg5: memref<1x32xf32, #tpu.memory_space<vmem>>, %arg6: memref<32x32xbf16, #tpu.memory_space<vmem>>, %arg7: memref<1x32xf32, #tpu.memory_space<vmem>>, %arg8: memref<32x32xbf16, #tpu.memory_space<vmem>>, %arg9: memref<1x32xf32, #tpu.memory_space<vmem>>, %arg10: memref<32x32xbf16, #tpu.memory_space<vmem>>, %arg11: memref<1x32xf32, #tpu.memory_space<vmem>>, %arg12: memref<1x32xf32, #tpu.memory_space<vmem>>, %arg13: memref<1x32xf32, #tpu.memory_space<vmem>>, %arg14: memref<1x8x32xf32, #tpu.memory_space<vmem>>, %arg15: memref<4x8x8xbf16, #tpu.memory_space<vmem>>, %arg16: memref<4x8x8xbf16, #tpu.memory_space<vmem>>) attributes {dimension_semantics = [#tpu.dimension_semantics<parallel>, #tpu.dimension_semantics<arbitrary>], iteration_bounds = array<i64: 2, 1>, scalar_prefetch = 0 : i64, scratch_operands = 2 : i64, tpu.core_type = #tpu.core_type<tc>, window_params = [{transform_indices = @transform_0, window_bounds = array<i64: 1, 8, 32>}, {transform_indices = @transform_1, window_bounds = array<i64: 1, 1, 8>}, {pipeline_mode = #tpu.pipeline_mode<synchronous>, transform_indices = @transform_2, window_bounds = array<i64: 32, 32>}, {pipeline_mode = #tpu.pipeline_mode<synchronous>, transform_indices = @transform_3, window_bounds = array<i64: 1, 32>}, {pipeline_mode = #tpu.pipeline_mode<synchronous>, transform_indices = @transform_4, window_bounds = array<i64: 32, 32>}, {pipeline_mode = #tpu.pipeline_mode<synchronous>, transform_indices = @transform_5, window_bounds = array<i64: 1, 32>}, {pipeline_mode = #tpu.pipeline_mode<synchronous>, transform_indices = @transform_6, window_bounds = array<i64: 32, 32>}, {pipeline_mode = #tpu.pipeline_mode<synchronous>, transform_indices = @transform_7, window_bounds = array<i64: 1, 32>}, {pipeline_mode = #tpu.pipeline_mode<synchronous>, transform_indices = @transform_8, window_bounds = array<i64: 32, 32>}, {pipeline_mode = #tpu.pipeline_mode<synchronous>, transform_indices = @transform_9, window_bounds = array<i64: 1, 32>}, {pipeline_mode = #tpu.pipeline_mode<synchronous>, transform_indices = @transform_10, window_bounds = array<i64: 1, 32>}, {pipeline_mode = #tpu.pipeline_mode<synchronous>, transform_indices = @transform_11, window_bounds = array<i64: 1, 32>}, {transform_indices = @transform_12, window_bounds = array<i64: 1, 8, 32>}]} {
    %c0_i32 = arith.constant 0 : i32
    %0 = arith.cmpi eq, %arg1, %c0_i32 : i32
    %1 = arith.extui %0 : i1 to i32
    %c0_i32_0 = arith.constant 0 : i32
    %2 = arith.cmpi ne, %1, %c0_i32_0 : i32
    scf.if %2 {
      %c0_36 = arith.constant 0 : index
      %c0_37 = arith.constant 0 : index
      %c0_38 = arith.constant 0 : index
      %75 = vector.load %arg2[%c0_36, %c0_37, %c0_38] : memref<1x8x32xf32, #tpu.memory_space<vmem>>, vector<1x8x32xf32>
      %76 = vector.shape_cast %75 : vector<1x8x32xf32> to vector<8x32xf32>
      %77 = arith.truncf %76 : vector<8x32xf32> to vector<8x32xbf16>
      %c0_39 = arith.constant 0 : index
      %c0_40 = arith.constant 0 : index
      %78 = vector.load %arg6[%c0_39, %c0_40] : memref<32x32xbf16, #tpu.memory_space<vmem>>, vector<32x32xbf16>
      %cst_41 = arith.constant dense<0.000000e+00> : vector<8x32xf32>
      %79 = tpu.matmul %77, %78, %cst_41 {dimension_numbers = #tpu.dot_dimension_numbers<[1], [0], [0], [1], [0, 0, 1, 1], [], []>} : vector<8x32xbf16>, vector<32x32xbf16>, vector<8x32xf32> -> vector<8x32xf32>
      %c0_42 = arith.constant 0 : index
      %c0_43 = arith.constant 0 : index
      %80 = vector.load %arg7[%c0_42, %c0_43] : memref<1x32xf32, #tpu.memory_space<vmem>>, vector<1x32xf32>
      %81 = vector.broadcast %80 : vector<1x32xf32> to vector<8x32xf32>
      %82 = arith.addf %79, %81 : vector<8x32xf32>
      %c0_44 = arith.constant 0 : index
      %c0_45 = arith.constant 0 : index
      %83 = vector.load %arg8[%c0_44, %c0_45] : memref<32x32xbf16, #tpu.memory_space<vmem>>, vector<32x32xbf16>
      %cst_46 = arith.constant dense<0.000000e+00> : vector<8x32xf32>
      %84 = tpu.matmul %77, %83, %cst_46 {dimension_numbers = #tpu.dot_dimension_numbers<[1], [0], [0], [1], [0, 0, 1, 1], [], []>} : vector<8x32xbf16>, vector<32x32xbf16>, vector<8x32xf32> -> vector<8x32xf32>
      %c0_47 = arith.constant 0 : index
      %c0_48 = arith.constant 0 : index
      %85 = vector.load %arg9[%c0_47, %c0_48] : memref<1x32xf32, #tpu.memory_space<vmem>>, vector<1x32xf32>
      %86 = vector.broadcast %85 : vector<1x32xf32> to vector<8x32xf32>
      %87 = arith.addf %84, %86 : vector<8x32xf32>
      %88 = vector.shape_cast %82 : vector<8x32xf32> to vector<8x4x8xf32>
      %89 = tpu.transpose %88, [1, 0, 2] : vector<8x4x8xf32> -> vector<4x8x8xf32>
      %90 = tpu.transpose %89, [0, 2, 1] : vector<4x8x8xf32> -> vector<4x8x8xf32>
      %91 = arith.truncf %90 : vector<4x8x8xf32> to vector<4x8x8xbf16>
      %c0_49 = arith.constant 0 : index
      %c0_50 = arith.constant 0 : index
      %c0_51 = arith.constant 0 : index
      %92 = vector.load %arg15[%c0_49, %c0_50, %c0_51] : memref<4x8x8xbf16, #tpu.memory_space<vmem>>, vector<4x8x8xbf16>
      tpu.vector_store %arg15[%c0_49, %c0_50, %c0_51], %91 {strides = array<i32>} : memref<4x8x8xbf16, #tpu.memory_space<vmem>>, vector<4x8x8xbf16>,
      %93 = vector.shape_cast %87 : vector<8x32xf32> to vector<8x4x8xf32>
      %94 = tpu.transpose %93, [1, 0, 2] : vector<8x4x8xf32> -> vector<4x8x8xf32>
      %95 = arith.truncf %94 : vector<4x8x8xf32> to vector<4x8x8xbf16>
      %c0_52 = arith.constant 0 : index
      %c0_53 = arith.constant 0 : index
      %c0_54 = arith.constant 0 : index
      %96 = vector.load %arg16[%c0_52, %c0_53, %c0_54] : memref<4x8x8xbf16, #tpu.memory_space<vmem>>, vector<4x8x8xbf16>
      tpu.vector_store %arg16[%c0_52, %c0_53, %c0_54], %95 {strides = array<i32>} : memref<4x8x8xbf16, #tpu.memory_space<vmem>>, vector<4x8x8xbf16>,
    } else {
    }
    %c8_i32 = arith.constant 8 : i32
    %3 = arith.muli %arg1, %c8_i32 : i32
    %4 = tpu.assume_multiple %3, 8 : i32
    %c0 = arith.constant 0 : index
    %5 = arith.index_cast %4 : i32 to index
    %c0_1 = arith.constant 0 : index
    %6 = vector.load %arg2[%c0, %5, %c0_1] : memref<1x8x32xf32, #tpu.memory_space<vmem>>, vector<1x8x32xf32>
    %7 = vector.shape_cast %6 : vector<1x8x32xf32> to vector<8x32xf32>
    %c0_2 = arith.constant 0 : index
    %c0_3 = arith.constant 0 : index
    %c0_4 = arith.constant 0 : index
    %8 = vector.load %arg3[%c0_2, %c0_3, %c0_4] : memref<1x1x8xf32, #tpu.memory_space<vmem>>, vector<1x1x8xf32>
    %9 = vector.shape_cast %8 : vector<1x1x8xf32> to vector<1x8xf32>
    %10 = arith.truncf %7 : vector<8x32xf32> to vector<8x32xbf16>
    %c0_5 = arith.constant 0 : index
    %c0_6 = arith.constant 0 : index
    %11 = vector.load %arg4[%c0_5, %c0_6] : memref<32x32xbf16, #tpu.memory_space<vmem>>, vector<32x32xbf16>
    %cst = arith.constant dense<0.000000e+00> : vector<8x32xf32>
    %12 = tpu.matmul %10, %11, %cst {dimension_numbers = #tpu.dot_dimension_numbers<[1], [0], [0], [1], [0, 0, 1, 1], [], []>} : vector<8x32xbf16>, vector<32x32xbf16>, vector<8x32xf32> -> vector<8x32xf32>
    %c0_7 = arith.constant 0 : index
    %c0_8 = arith.constant 0 : index
    %13 = vector.load %arg5[%c0_7, %c0_8] : memref<1x32xf32, #tpu.memory_space<vmem>>, vector<1x32xf32>
    %14 = vector.broadcast %13 : vector<1x32xf32> to vector<8x32xf32>
    %15 = arith.addf %12, %14 : vector<8x32xf32>
    %16 = vector.shape_cast %15 : vector<8x32xf32> to vector<8x4x8xf32>
    %17 = tpu.transpose %16, [1, 0, 2] : vector<8x4x8xf32> -> vector<4x8x8xf32>
    %18 = arith.truncf %17 : vector<4x8x8xf32> to vector<4x8x8xbf16>
    %c0_9 = arith.constant 0 : index
    %c0_10 = arith.constant 0 : index
    %c0_11 = arith.constant 0 : index
    %19 = vector.load %arg15[%c0_9, %c0_10, %c0_11] : memref<4x8x8xbf16, #tpu.memory_space<vmem>>, vector<4x8x8xbf16>
    "tpu.trace_start"() <{level = 10 : i32, message = "hqd,hds->hqs"}> : () -> ()
    %cst_12 = arith.constant dense<0.000000e+00> : vector<4x8x8xf32>
    %20 = tpu.matmul %18, %19, %cst_12 {dimension_numbers = #tpu.dot_dimension_numbers<[2], [1], [1], [2], [0, 0, 0, 1, 1, 2], [0], [0]>} : vector<4x8x8xbf16>, vector<4x8x8xbf16>, vector<4x8x8xf32> -> vector<4x8x8xf32>
    "tpu.trace_stop"() : () -> ()
    %21 = vector.shape_cast %9 : vector<1x8xf32> to vector<1x1x8xf32>
    %22 = vector.broadcast %21 : vector<1x1x8xf32> to vector<4x8x8xf32>
    %23 = arith.addf %20, %22 : vector<4x8x8xf32>
    %cst_13 = arith.constant dense<0xFF800000> : vector<4x8xf32>
    %24 = vector.multi_reduction <maximumf>, %23, %cst_13 [2] : vector<4x8x8xf32> to vector<4x8xf32>
    %25 = vector.shape_cast %24 : vector<4x8xf32> to vector<4x8x1xf32>
    %26 = vector.broadcast %25 : vector<4x8x1xf32> to vector<4x8x8xf32>
    %27 = arith.subf %23, %26 : vector<4x8x8xf32>
    %28 = math.exp %27 : vector<4x8x8xf32>
    %cst_14 = arith.constant dense<0.000000e+00> : vector<4x8xf32>
    %29 = vector.multi_reduction <add>, %28, %cst_14 [2] : vector<4x8x8xf32> to vector<4x8xf32>
    %30 = vector.shape_cast %29 : vector<4x8xf32> to vector<4x8x1xf32>
    %31 = tpu.reciprocal %30 {approx = true} : vector<4x8x1xf32> -> vector<4x8x1xf32>
    %32 = vector.broadcast %31 : vector<4x8x1xf32> to vector<4x8x8xf32>
    %33 = arith.mulf %28, %32 : vector<4x8x8xf32>
    %34 = arith.truncf %33 : vector<4x8x8xf32> to vector<4x8x8xbf16>
    %c0_15 = arith.constant 0 : index
    %c0_16 = arith.constant 0 : index
    %c0_17 = arith.constant 0 : index
    %35 = vector.load %arg16[%c0_15, %c0_16, %c0_17] : memref<4x8x8xbf16, #tpu.memory_space<vmem>>, vector<4x8x8xbf16>
    "tpu.trace_start"() <{level = 10 : i32, message = "hqs,hsd->hqd"}> : () -> ()
    %cst_18 = arith.constant dense<0.000000e+00> : vector<4x8x8xf32>
    %36 = tpu.matmul %34, %35, %cst_18 {dimension_numbers = #tpu.dot_dimension_numbers<[2], [1], [1], [2], [0, 0, 0, 1, 1, 2], [0], [0]>} : vector<4x8x8xbf16>, vector<4x8x8xbf16>, vector<4x8x8xf32> -> vector<4x8x8xf32>
    "tpu.trace_stop"() : () -> ()
    %37 = tpu.transpose %36, [1, 0, 2] : vector<4x8x8xf32> -> vector<8x4x8xf32>
    %38 = vector.shape_cast %37 : vector<8x4x8xf32> to vector<8x32xf32>
    %39 = arith.truncf %38 : vector<8x32xf32> to vector<8x32xbf16>
    %c0_19 = arith.constant 0 : index
    %c0_20 = arith.constant 0 : index
    %40 = vector.load %arg10[%c0_19, %c0_20] : memref<32x32xbf16, #tpu.memory_space<vmem>>, vector<32x32xbf16>
    %cst_21 = arith.constant dense<0.000000e+00> : vector<8x32xf32>
    %41 = tpu.matmul %39, %40, %cst_21 {dimension_numbers = #tpu.dot_dimension_numbers<[1], [0], [0], [1], [0, 0, 1, 1], [], []>} : vector<8x32xbf16>, vector<32x32xbf16>, vector<8x32xf32> -> vector<8x32xf32>
    %c0_22 = arith.constant 0 : index
    %c0_23 = arith.constant 0 : index
    %42 = vector.load %arg11[%c0_22, %c0_23] : memref<1x32xf32, #tpu.memory_space<vmem>>, vector<1x32xf32>
    %43 = vector.broadcast %42 : vector<1x32xf32> to vector<8x32xf32>
    %44 = arith.addf %41, %43 : vector<8x32xf32>
    %45 = arith.addf %44, %7 : vector<8x32xf32>
    %cst_24 = arith.constant dense<0.000000e+00> : vector<8xf32>
    %46 = vector.multi_reduction <add>, %45, %cst_24 [1] : vector<8x32xf32> to vector<8xf32>
    %47 = vector.shape_cast %46 : vector<8xf32> to vector<8x1xf32>
    %cst_25 = arith.constant 3.200000e+01 : f32
    %48 = vector.broadcast %cst_25 : f32 to vector<8x1xf32>
    %49 = arith.divf %47, %48 : vector<8x1xf32>
    %50 = vector.broadcast %49 : vector<8x1xf32> to vector<8x32xf32>
    %51 = arith.subf %45, %50 : vector<8x32xf32>
    %52 = vector.broadcast %49 : vector<8x1xf32> to vector<8x32xf32>
    %53 = arith.subf %45, %52 : vector<8x32xf32>
    %54 = arith.mulf %51, %53 : vector<8x32xf32>
    %cst_26 = arith.constant dense<0.000000e+00> : vector<8xf32>
    %55 = vector.multi_reduction <add>, %54, %cst_26 [1] : vector<8x32xf32> to vector<8xf32>
    %56 = vector.shape_cast %55 : vector<8xf32> to vector<8x1xf32>
    %cst_27 = arith.constant 3.200000e+01 : f32
    %57 = vector.broadcast %cst_27 : f32 to vector<8x1xf32>
    %58 = arith.divf %56, %57 : vector<8x1xf32>
    %59 = vector.broadcast %49 : vector<8x1xf32> to vector<8x32xf32>
    %60 = arith.subf %45, %59 : vector<8x32xf32>
    %cst_28 = arith.constant 9.99999996E-13 : f32
    %61 = vector.broadcast %cst_28 : f32 to vector<8x1xf32>
    %62 = arith.addf %58, %61 : vector<8x1xf32>
    %63 = math.rsqrt %62 : vector<8x1xf32>
    %64 = vector.broadcast %63 : vector<8x1xf32> to vector<8x32xf32>
    %65 = arith.mulf %60, %64 : vector<8x32xf32>
    %c0_29 = arith.constant 0 : index
    %c0_30 = arith.constant 0 : index
    %66 = vector.load %arg12[%c0_29, %c0_30] : memref<1x32xf32, #tpu.memory_space<vmem>>, vector<1x32xf32>
    %67 = vector.broadcast %66 : vector<1x32xf32> to vector<8x32xf32>
    %68 = arith.mulf %65, %67 : vector<8x32xf32>
    %c0_31 = arith.constant 0 : index
    %c0_32 = arith.constant 0 : index
    %69 = vector.load %arg13[%c0_31, %c0_32] : memref<1x32xf32, #tpu.memory_space<vmem>>, vector<1x32xf32>
    %70 = vector.broadcast %69 : vector<1x32xf32> to vector<8x32xf32>
    %71 = arith.addf %68, %70 : vector<8x32xf32>
    %c0_33 = arith.constant 0 : index
    %c0_34 = arith.constant 0 : index
    %c0_35 = arith.constant 0 : index
    %72 = vector.load %arg14[%c0_33, %c0_34, %c0_35] : memref<1x8x32xf32, #tpu.memory_space<vmem>>, vector<1x8x32xf32>
    %73 = vector.shape_cast %72 : vector<1x8x32xf32> to vector<8x32xf32>
    %74 = vector.shape_cast %71 : vector<8x32xf32> to vector<1x8x32xf32>
    tpu.vector_store %arg14[%c0_33, %c0_34, %c0_35], %74 {strides = array<i32>} : memref<1x8x32xf32, #tpu.memory_space<vmem>>, vector<1x8x32xf32>,
    return
  }
  func.func @transform_0(%arg0: i32, %arg1: i32) -> (i32, i32, i32) {
    %c0_i32 = arith.constant 0 : i32
    %c0_i32_0 = arith.constant 0 : i32
    %c0_i32_1 = arith.constant 0 : i32
    return %arg0, %c0_i32, %c0_i32_0 : i32, i32, i32
  }
  func.func @transform_1(%arg0: i32, %arg1: i32) -> (i32, i32, i32) {
    %c0_i32 = arith.constant 0 : i32
    %c0_i32_0 = arith.constant 0 : i32
    %c0_i32_1 = arith.constant 0 : i32
    return %arg0, %c0_i32, %c0_i32_0 : i32, i32, i32
  }
  func.func @transform_2(%arg0: i32, %arg1: i32) -> (i32, i32) {
    %c0_i32 = arith.constant 0 : i32
    %c0_i32_0 = arith.constant 0 : i32
    %c0_i32_1 = arith.constant 0 : i32
    return %c0_i32, %c0_i32_0 : i32, i32
  }
  func.func @transform_3(%arg0: i32, %arg1: i32) -> (i32, i32) {
    %c0_i32 = arith.constant 0 : i32
    %c0_i32_0 = arith.constant 0 : i32
    %c0_i32_1 = arith.constant 0 : i32
    return %c0_i32, %c0_i32_0 : i32, i32
  }
  func.func @transform_4(%arg0: i32, %arg1: i32) -> (i32, i32) {
    %c0_i32 = arith.constant 0 : i32
    %c0_i32_0 = arith.constant 0 : i32
    %c0_i32_1 = arith.constant 0 : i32
    return %c0_i32, %c0_i32_0 : i32, i32
  }
  func.func @transform_5(%arg0: i32, %arg1: i32) -> (i32, i32) {
    %c0_i32 = arith.constant 0 : i32
    %c0_i32_0 = arith.constant 0 : i32
    %c0_i32_1 = arith.constant 0 : i32
    return %c0_i32, %c0_i32_0 : i32, i32
  }
  func.func @transform_6(%arg0: i32, %arg1: i32) -> (i32, i32) {
    %c0_i32 = arith.constant 0 : i32
    %c0_i32_0 = arith.constant 0 : i32
    %c0_i32_1 = arith.constant 0 : i32
    return %c0_i32, %c0_i32_0 : i32, i32
  }
  func.func @transform_7(%arg0: i32, %arg1: i32) -> (i32, i32) {
    %c0_i32 = arith.constant 0 : i32
    %c0_i32_0 = arith.constant 0 : i32
    %c0_i32_1 = arith.constant 0 : i32
    return %c0_i32, %c0_i32_0 : i32, i32
  }
  func.func @transform_8(%arg0: i32, %arg1: i32) -> (i32, i32) {
    %c0_i32 = arith.constant 0 : i32
    %c0_i32_0 = arith.constant 0 : i32
    %c0_i32_1 = arith.constant 0 : i32
    return %c0_i32, %c0_i32_0 : i32, i32
  }
  func.func @transform_9(%arg0: i32, %arg1: i32) -> (i32, i32) {
    %c0_i32 = arith.constant 0 : i32
    %c0_i32_0 = arith.constant 0 : i32
    %c0_i32_1 = arith.constant 0 : i32
    return %c0_i32, %c0_i32_0 : i32, i32
  }
  func.func @transform_10(%arg0: i32, %arg1: i32) -> (i32, i32) {
    %c0_i32 = arith.constant 0 : i32
    %c0_i32_0 = arith.constant 0 : i32
    %c0_i32_1 = arith.constant 0 : i32
    return %c0_i32, %c0_i32_0 : i32, i32
  }
  func.func @transform_11(%arg0: i32, %arg1: i32) -> (i32, i32) {
    %c0_i32 = arith.constant 0 : i32
    %c0_i32_0 = arith.constant 0 : i32
    %c0_i32_1 = arith.constant 0 : i32
    return %c0_i32, %c0_i32_0 : i32, i32
  }
  func.func @transform_12(%arg0: i32, %arg1: i32) -> (i32, i32, i32) {
    %c0_i32 = arith.constant 0 : i32
    %c0_i32_0 = arith.constant 0 : i32
    return %arg0, %arg1, %c0_i32 : i32, i32, i32
  }
}

</mosaic_0001>

<llo_original>
// kernel: tpu_custom_call.1
$region0: #{tpu_custom_call.1}
  #allocation0 [shape = 'u32[]', space=smem, size = 0x4, offset = 0x4, fixed_abs, tag = 'smem constant byte address 0x4 - core index']
  #allocation1 [shape = 'u32[144,128]{1,0:T(1,128)}', space=vmem, size = 0x12000, scoped, tag = 'internal scratch']
  #allocation2 [shape = 'bf16[4,8,8]{2,1,0:T(8,128)(2,1)}', space=vmem, size = 0x2000, scoped, tag = 'scratch operand']
  #allocation3 [shape = 'bf16[4,8,8]{2,1,0:T(8,128)(2,1)}', space=vmem, size = 0x2000, scoped, tag = 'scratch operand']
  %s0 = inlined_call_operand.hbm [shape: f32[2,8,32], index: 0, kind: input, shape index: {}]
  %s1 = inlined_call_operand.hbm [shape: f32[2,1,8], index: 1, kind: input, shape index: {}]
  %s2 = inlined_call_operand.hbm [shape: bf16[32,32], index: 2, kind: input, shape index: {}]
  %s3 = inlined_call_operand.hbm [shape: f32[1,32], index: 3, kind: input, shape index: {}]
  %s4 = inlined_call_operand.hbm [shape: bf16[32,32], index: 4, kind: input, shape index: {}]
  %s5 = inlined_call_operand.hbm [shape: f32[1,32], index: 5, kind: input, shape index: {}]
  %s6 = inlined_call_operand.hbm [shape: bf16[32,32], index: 6, kind: input, shape index: {}]
  %s7 = inlined_call_operand.hbm [shape: f32[1,32], index: 7, kind: input, shape index: {}]
  %s8 = inlined_call_operand.hbm [shape: bf16[32,32], index: 8, kind: input, shape index: {}]
  %s9 = inlined_call_operand.hbm [shape: f32[1,32], index: 9, kind: input, shape index: {}]
  %s10 = inlined_call_operand.hbm [shape: f32[1,32], index: 10, kind: input, shape index: {}]
  %s11 = inlined_call_operand.hbm [shape: f32[1,32], index: 11, kind: input, shape index: {}]
  %s12 = inlined_call_operand.hbm [shape: f32[2,8,32], index: 12, kind: output, shape index: {}]
  %s13 = sld [smem:[#allocation0]]
  $region133: #{tpu_custom_call.1} parent=0
    _
  %s15 = ssub.s32 1, %s13
  %s16 = scalar_select 0, %s15, %s13
  $region1: #{tpu_custom_call.1} parent=0
    #allocation4 [shape = 'u8[8192]{0}', space=vmem, size = 0x2000, scoped, tag = 'input window, operand 0']
    #allocation5 [shape = 's32[2]{0}', space=sflag, size = 0x8, scoped, tag = 'scoped memory for tpu_custom_call.1']
    #allocation6 [shape = 's32[2]{0}', space=sflag, size = 0x8, scoped, tag = 'scoped memory for tpu_custom_call.1']
    #allocation7 [shape = 'u8[1024]{0}', space=vmem, size = 0x400, scoped, tag = 'input window, operand 1']
    #allocation8 [shape = 's32[2]{0}', space=sflag, size = 0x8, scoped, tag = 'scoped memory for tpu_custom_call.1']
    #allocation9 [shape = 'u8[8192]{0}', space=vmem, size = 0x2000, scoped, tag = 'input window, operand 2, single buffered']
    #allocation10 [shape = 'u8[512]{0}', space=vmem, size = 0x400, scoped, tag = 'input window, operand 3, single buffered']
    #allocation11 [shape = 's32[1]{0}', space=sflag, size = 0x4, scoped, tag = 'scoped memory for tpu_custom_call.1']
    #allocation12 [shape = 'u8[8192]{0}', space=vmem, size = 0x2000, scoped, tag = 'input window, operand 4, single buffered']
    #allocation13 [shape = 'u8[512]{0}', space=vmem, size = 0x400, scoped, tag = 'input window, operand 5, single buffered']
    #allocation14 [shape = 's32[1]{0}', space=sflag, size = 0x4, scoped, tag = 'scoped memory for tpu_custom_call.1']
    #allocation15 [shape = 'u8[8192]{0}', space=vmem, size = 0x2000, scoped, tag = 'input window, operand 6, single buffered']
    #allocation16 [shape = 'u8[512]{0}', space=vmem, size = 0x400, scoped, tag = 'input window, operand 7, single buffered']
    #allocation17 [shape = 's32[1]{0}', space=sflag, size = 0x4, scoped, tag = 'scoped memory for tpu_custom_call.1']
    #allocation18 [shape = 'u8[8192]{0}', space=vmem, size = 0x2000, scoped, tag = 'input window, operand 8, single buffered']
    #allocation19 [shape = 'u8[512]{0}', space=vmem, size = 0x400, scoped, tag = 'input window, operand 9, single buffered']
    #allocation20 [shape = 's32[1]{0}', space=sflag, size = 0x4, scoped, tag = 'scoped memory for tpu_custom_call.1']
    #allocation21 [shape = 'u8[512]{0}', space=vmem, size = 0x400, scoped, tag = 'input window, operand 10, single buffered']
    #allocation22 [shape = 'u8[512]{0}', space=vmem, size = 0x400, scoped, tag = 'input window, operand 11, single buffered']
    #allocation23 [shape = 's32[1]{0}', space=sflag, size = 0x4, scoped, tag = 'scoped memory for tpu_custom_call.1']
    #allocation24 [shape = 'u8[8192]{0}', space=vmem, size = 0x2000, scoped, tag = 'output window, operand 0']
    %17 = vsyncpa [#allocation5], 0
    %s18 = scalar_lea.sflag [#allocation5], 1
    %19 = vsyncpa %s18, 0
    %20 = vsyncpa [#allocation8], 0
    %s21 = scalar_lea.sflag [#allocation8], 1
    %22 = vsyncpa %s21, 0
    %23 = vsyncpa [#allocation11], 0
    %24 = vsyncpa [#allocation14], 0
    %25 = vsyncpa [#allocation17], 0
    %26 = vsyncpa [#allocation20], 0
    %27 = vsyncpa [#allocation23], 0
    %28 = vsyncpa [#allocation6], 0
    %s29 = scalar_lea.sflag [#allocation6], 1
    %30 = vsyncpa %s29, 0
    loop: start=0, step=1, limit=4
    $region2: #{tpu_custom_call.1} parent=1 // loop_pre_header
      _
    $region3: #{tpu_custom_call.1} parent=1 // loop_header
      %s32 = sphi 0, %s36
      %p33 = scmp.ge.s32.totalorder %s32, 4
      %s39 = sphi 0, %s51
      %s40 = sphi 0, %s47
      %s41 = sphi 0, %s39
      %s42 = sphi 0, %s40
      %s43 = sphi 0, %s41
      %s44 = sphi 0, %s42
      %s54 = sphi 0, %s56
      %s57 = sphi 0, %s54
      %s58 = sphi 0, %s57
      %s74 = sphi 0, %s58
      %s80 = sphi 0, %s82
      %s83 = sphi 0, %s80
      %s84 = sphi 0, %s83
      %s100 = sphi 0, %s84
      %s104 = sphi 0, %s104
      %s106 = sphi 0, %s104
      %s107 = sphi 0, %s106
      %s121 = sphi 0, %s107
      %s125 = sphi 0, %s125
      %s127 = sphi 0, %s125
      %s128 = sphi 0, %s127
      %s142 = sphi 0, %s128
      %s146 = sphi 0, %s146
      %s148 = sphi 0, %s146
      %s149 = sphi 0, %s148
      %s163 = sphi 0, %s149
      %s167 = sphi 0, %s167
      %s169 = sphi 0, %s167
      %s170 = sphi 0, %s169
      %s184 = sphi 0, %s170
      %s188 = sphi 0, %s188
      %s190 = sphi 0, %s188
      %s191 = sphi 0, %s190
      %s205 = sphi 0, %s191
      %s209 = sphi 0, %s209
      %s211 = sphi 0, %s209
      %s212 = sphi 0, %s211
      %s226 = sphi 0, %s212
      %s230 = sphi 0, %s230
      %s232 = sphi 0, %s230
      %s233 = sphi 0, %s232
      %s247 = sphi 0, %s233
      %s251 = sphi 0, %s251
      %s253 = sphi 0, %s251
      %s254 = sphi 0, %s253
      %s268 = sphi 0, %s254
      %s272 = sphi 0, %s272
      %s274 = sphi 0, %s272
      %s275 = sphi 0, %s274
      %s289 = sphi 0, %s275
      %s293 = sphi 0, %s293
      %s295 = sphi 0, %s293
      %s296 = sphi 0, %s295
      %s310 = sphi 0, %s296
      %s318 = sphi 0, %s320
      %s321 = sphi 0, %s318
      %s322 = sphi 0, %s321
      %s338 = sphi 0, %s322
    $region4: #{tpu_custom_call.1} parent=1 // loop_header_branch
      %35 = sbr.rel (%p33) target = $region8
    $region5: #{tpu_custom_call.1} parent=1 // loop_body
      %s37 = ssub.s32 %s32, 1
      %s38 = ssub.s32 %s32, 2
      %s45 = sadd.s32 1, %s40
      %p46 = scmp.ge.s32.totalorder %s45, 1
      %s47 = scalar_select %p46, 0, %s45
      %s48 = sadd.s32 1, %s39
      %s49 = scalar_select %p46, %s48, %s39
      %p50 = scmp.ge.s32.totalorder %s49, 2
      %s51 = scalar_select %p50, 0, %s49
      %s52 = ssub.s32 %s39, %s51
      %p53 = scmp.eq.s32.totalorder %s52, 0
      %s55 = sadd.s32 %s54, 1
      %s56 = scalar_select %p53, %s54, %s55
      %p59 = pneg %p53
      %p60 = scmp.eq.s32.totalorder %s32, 1
      %p61 = por %p59, %p60
      %p62 = scmp.ne.s32.totalorder %s54, %s57
      %p63 = scmp.eq.s32.totalorder %s32, 0
      %p64 = por %p62, %p63
      %p65 = scmp.ne.s32.totalorder %s54, %s57
      %p66 = scmp.eq.s32.totalorder %s37, 1
      %p67 = por %p65, %p66
      %p68 = scmp.ne.s32.totalorder %s57, %s58
      %p69 = scmp.eq.s32.totalorder %s37, 0
      %p70 = por %p68, %p69
      %p71 = scmp.ne.s32.totalorder %s57, %s58
      %p72 = scmp.eq.s32.totalorder %s38, 1
      %p73 = por %p71, %p72
      %p75 = scmp.ne.s32.totalorder %s58, %s74
      %p76 = scmp.eq.s32.totalorder %s38, 0
      %p77 = por %p75, %p76
      %s78 = ssub.s32 %s39, %s51
      %p79 = scmp.eq.s32.totalorder %s78, 0
      %s81 = sadd.s32 %s80, 1
      %s82 = scalar_select %p79, %s80, %s81
      %p85 = pneg %p79
      %p86 = scmp.eq.s32.totalorder %s32, 1
      %p87 = por %p85, %p86
      %p88 = scmp.ne.s32.totalorder %s80, %s83
      %p89 = scmp.eq.s32.totalorder %s32, 0
      %p90 = por %p88, %p89
      %p91 = scmp.ne.s32.totalorder %s80, %s83
      %p92 = scmp.eq.s32.totalorder %s37, 1
      %p93 = por %p91, %p92
      %p94 = scmp.ne.s32.totalorder %s83, %s84
      %p95 = scmp.eq.s32.totalorder %s37, 0
      %p96 = por %p94, %p95
      %p97 = scmp.ne.s32.totalorder %s83, %s84
      %p98 = scmp.eq.s32.totalorder %s38, 1
      %p99 = por %p97, %p98
      %p101 = scmp.ne.s32.totalorder %s84, %s100
      %p102 = scmp.eq.s32.totalorder %s38, 0
      %p103 = por %p101, %p102
      %s105 = sadd.s32 %s104, 1
      %p108 = scmp.eq.s32.totalorder %s32, 1
      %p109 = scmp.ne.s32.totalorder %s104, %s106
      %p110 = scmp.eq.s32.totalorder %s32, 0
      %p111 = por %p109, %p110
      %p112 = scmp.ne.s32.totalorder %s104, %s106
      %p113 = scmp.eq.s32.totalorder %s37, 1
      %p114 = por %p112, %p113
      %p115 = scmp.ne.s32.totalorder %s106, %s107
      %p116 = scmp.eq.s32.totalorder %s37, 0
      %p117 = por %p115, %p116
      %p118 = scmp.ne.s32.totalorder %s106, %s107
      %p119 = scmp.eq.s32.totalorder %s38, 1
      %p120 = por %p118, %p119
      %p122 = scmp.ne.s32.totalorder %s107, %s121
      %p123 = scmp.eq.s32.totalorder %s38, 0
      %p124 = por %p122, %p123
      %s126 = sadd.s32 %s125, 1
      %p129 = scmp.eq.s32.totalorder %s32, 1
      %p130 = scmp.ne.s32.totalorder %s125, %s127
      %p131 = scmp.eq.s32.totalorder %s32, 0
      %p132 = por %p130, %p131
      %p133 = scmp.ne.s32.totalorder %s125, %s127
      %p134 = scmp.eq.s32.totalorder %s37, 1
      %p135 = por %p133, %p134
      %p136 = scmp.ne.s32.totalorder %s127, %s128
      %p137 = scmp.eq.s32.totalorder %s37, 0
      %p138 = por %p136, %p137
      %p139 = scmp.ne.s32.totalorder %s127, %s128
      %p140 = scmp.eq.s32.totalorder %s38, 1
      %p141 = por %p139, %p140
      %p143 = scmp.ne.s32.totalorder %s128, %s142
      %p144 = scmp.eq.s32.totalorder %s38, 0
      %p145 = por %p143, %p144
      %s147 = sadd.s32 %s146, 1
      %p150 = scmp.eq.s32.totalorder %s32, 1
      %p151 = scmp.ne.s32.totalorder %s146, %s148
      %p152 = scmp.eq.s32.totalorder %s32, 0
      %p153 = por %p151, %p152
      %p154 = scmp.ne.s32.totalorder %s146, %s148
      %p155 = scmp.eq.s32.totalorder %s37, 1
      %p156 = por %p154, %p155
      %p157 = scmp.ne.s32.totalorder %s148, %s149
      %p158 = scmp.eq.s32.totalorder %s37, 0
      %p159 = por %p157, %p158
      %p160 = scmp.ne.s32.totalorder %s148, %s149
      %p161 = scmp.eq.s32.totalorder %s38, 1
      %p162 = por %p160, %p161
      %p164 = scmp.ne.s32.totalorder %s149, %s163
      %p165 = scmp.eq.s32.totalorder %s38, 0
      %p166 = por %p164, %p165
      %s168 = sadd.s32 %s167, 1
      %p171 = scmp.eq.s32.totalorder %s32, 1
      %p172 = scmp.ne.s32.totalorder %s167, %s169
      %p173 = scmp.eq.s32.totalorder %s32, 0
      %p174 = por %p172, %p173
      %p175 = scmp.ne.s32.totalorder %s167, %s169
      %p176 = scmp.eq.s32.totalorder %s37, 1
      %p177 = por %p175, %p176
      %p178 = scmp.ne.s32.totalorder %s169, %s170
      %p179 = scmp.eq.s32.totalorder %s37, 0
      %p180 = por %p178, %p179
      %p181 = scmp.ne.s32.totalorder %s169, %s170
      %p182 = scmp.eq.s32.totalorder %s38, 1
      %p183 = por %p181, %p182
      %p185 = scmp.ne.s32.totalorder %s170, %s184
      %p186 = scmp.eq.s32.totalorder %s38, 0
      %p187 = por %p185, %p186
      %s189 = sadd.s32 %s188, 1
      %p192 = scmp.eq.s32.totalorder %s32, 1
      %p193 = scmp.ne.s32.totalorder %s188, %s190
      %p194 = scmp.eq.s32.totalorder %s32, 0
      %p195 = por %p193, %p194
      %p196 = scmp.ne.s32.totalorder %s188, %s190
      %p197 = scmp.eq.s32.totalorder %s37, 1
      %p198 = por %p196, %p197
      %p199 = scmp.ne.s32.totalorder %s190, %s191
      %p200 = scmp.eq.s32.totalorder %s37, 0
      %p201 = por %p199, %p200
      %p202 = scmp.ne.s32.totalorder %s190, %s191
      %p203 = scmp.eq.s32.totalorder %s38, 1
      %p204 = por %p202, %p203
      %p206 = scmp.ne.s32.totalorder %s191, %s205
      %p207 = scmp.eq.s32.totalorder %s38, 0
      %p208 = por %p206, %p207
      %s210 = sadd.s32 %s209, 1
      %p213 = scmp.eq.s32.totalorder %s32, 1
      %p214 = scmp.ne.s32.totalorder %s209, %s211
      %p215 = scmp.eq.s32.totalorder %s32, 0
      %p216 = por %p214, %p215
      %p217 = scmp.ne.s32.totalorder %s209, %s211
      %p218 = scmp.eq.s32.totalorder %s37, 1
      %p219 = por %p217, %p218
      %p220 = scmp.ne.s32.totalorder %s211, %s212
      %p221 = scmp.eq.s32.totalorder %s37, 0
      %p222 = por %p220, %p221
      %p223 = scmp.ne.s32.totalorder %s211, %s212
      %p224 = scmp.eq.s32.totalorder %s38, 1
      %p225 = por %p223, %p224
      %p227 = scmp.ne.s32.totalorder %s212, %s226
      %p228 = scmp.eq.s32.totalorder %s38, 0
      %p229 = por %p227, %p228
      %s231 = sadd.s32 %s230, 1
      %p234 = scmp.eq.s32.totalorder %s32, 1
      %p235 = scmp.ne.s32.totalorder %s230, %s232
      %p236 = scmp.eq.s32.totalorder %s32, 0
      %p237 = por %p235, %p236
      %p238 = scmp.ne.s32.totalorder %s230, %s232
      %p239 = scmp.eq.s32.totalorder %s37, 1
      %p240 = por %p238, %p239
      %p241 = scmp.ne.s32.totalorder %s232, %s233
      %p242 = scmp.eq.s32.totalorder %s37, 0
      %p243 = por %p241, %p242
      %p244 = scmp.ne.s32.totalorder %s232, %s233
      %p245 = scmp.eq.s32.totalorder %s38, 1
      %p246 = por %p244, %p245
      %p248 = scmp.ne.s32.totalorder %s233, %s247
      %p249 = scmp.eq.s32.totalorder %s38, 0
      %p250 = por %p248, %p249
      %s252 = sadd.s32 %s251, 1
      %p255 = scmp.eq.s32.totalorder %s32, 1
      %p256 = scmp.ne.s32.totalorder %s251, %s253
      %p257 = scmp.eq.s32.totalorder %s32, 0
      %p258 = por %p256, %p257
      %p259 = scmp.ne.s32.totalorder %s251, %s253
      %p260 = scmp.eq.s32.totalorder %s37, 1
      %p261 = por %p259, %p260
      %p262 = scmp.ne.s32.totalorder %s253, %s254
      %p263 = scmp.eq.s32.totalorder %s37, 0
      %p264 = por %p262, %p263
      %p265 = scmp.ne.s32.totalorder %s253, %s254
      %p266 = scmp.eq.s32.totalorder %s38, 1
      %p267 = por %p265, %p266
      %p269 = scmp.ne.s32.totalorder %s254, %s268
      %p270 = scmp.eq.s32.totalorder %s38, 0
      %p271 = por %p269, %p270
      %s273 = sadd.s32 %s272, 1
      %p276 = scmp.eq.s32.totalorder %s32, 1
      %p277 = scmp.ne.s32.totalorder %s272, %s274
      %p278 = scmp.eq.s32.totalorder %s32, 0
      %p279 = por %p277, %p278
      %p280 = scmp.ne.s32.totalorder %s272, %s274
      %p281 = scmp.eq.s32.totalorder %s37, 1
      %p282 = por %p280, %p281
      %p283 = scmp.ne.s32.totalorder %s274, %s275
      %p284 = scmp.eq.s32.totalorder %s37, 0
      %p285 = por %p283, %p284
      %p286 = scmp.ne.s32.totalorder %s274, %s275
      %p287 = scmp.eq.s32.totalorder %s38, 1
      %p288 = por %p286, %p287
      %p290 = scmp.ne.s32.totalorder %s275, %s289
      %p291 = scmp.eq.s32.totalorder %s38, 0
      %p292 = por %p290, %p291
      %s294 = sadd.s32 %s293, 1
      %p297 = scmp.eq.s32.totalorder %s32, 1
      %p298 = scmp.ne.s32.totalorder %s293, %s295
      %p299 = scmp.eq.s32.totalorder %s32, 0
      %p300 = por %p298, %p299
      %p301 = scmp.ne.s32.totalorder %s293, %s295
      %p302 = scmp.eq.s32.totalorder %s37, 1
      %p303 = por %p301, %p302
      %p304 = scmp.ne.s32.totalorder %s295, %s296
      %p305 = scmp.eq.s32.totalorder %s37, 0
      %p306 = por %p304, %p305
      %p307 = scmp.ne.s32.totalorder %s295, %s296
      %p308 = scmp.eq.s32.totalorder %s38, 1
      %p309 = por %p307, %p308
      %p311 = scmp.ne.s32.totalorder %s296, %s310
      %p312 = scmp.eq.s32.totalorder %s38, 0
      %p313 = por %p311, %p312
      %s314 = ssub.s32 %s39, %s51
      %s315 = ssub.s32 %s40, %s47
      %s316 = sor.u32 %s314, %s315
      %p317 = scmp.eq.s32.totalorder %s316, 0
      %s319 = sadd.s32 %s318, 1
      %s320 = scalar_select %p317, %s318, %s319
      %p323 = pneg %p317
      %p324 = scmp.eq.s32.totalorder %s32, 1
      %p325 = por %p323, %p324
      %p326 = scmp.ne.s32.totalorder %s318, %s321
      %p327 = scmp.eq.s32.totalorder %s32, 0
      %p328 = por %p326, %p327
      %p329 = scmp.ne.s32.totalorder %s318, %s321
      %p330 = scmp.eq.s32.totalorder %s37, 1
      %p331 = por %p329, %p330
      %p332 = scmp.ne.s32.totalorder %s321, %s322
      %p333 = scmp.eq.s32.totalorder %s37, 0
      %p334 = por %p332, %p333
      %p335 = scmp.ne.s32.totalorder %s321, %s322
      %p336 = scmp.eq.s32.totalorder %s38, 1
      %p337 = por %p335, %p336
      %p339 = scmp.ne.s32.totalorder %s322, %s338
      %p340 = scmp.eq.s32.totalorder %s38, 0
      %p341 = por %p339, %p340
      %p342 = scmp.le.s32.totalorder 1, %s32
      %p343 = scmp.lt.s32.totalorder %s32, 3
      %p344 = pnand %p342, %p343
      %p345 = pneg %p344
      // Predicated region
      $region9: #{tpu_custom_call.1} parent=5 // pred_check
        _
      $region10: #{tpu_custom_call.1} parent=5 // pred_check_branch
        %347 = sbr.rel (%p344) target = $region12
      $region11: #{tpu_custom_call.1} parent=5 // pred_region
        %s348 = ssub.s32 %s32, 1
        // Predicated region
        $region13: #{tpu_custom_call.1} parent=11 // pred_check
          %p349 = pneg %p117
        $region14: #{tpu_custom_call.1} parent=11 // pred_check_branch
          %351 = sbr.rel (%p349) target = $region16
        $region15: #{tpu_custom_call.1} parent=11 // pred_region
          %s353 = ssub.s32 256, 256
          %354 = vsyncadd [#allocation8], %s353
          %s355 = sshll.u32 [#allocation9], 4
          %s356 = int_to_ptr.vmem [resolvable:$true] %s355
          %361 = dma.hbm_to_vmem [thread:$0]  %s2, 256, %s356, [#allocation8], 64, 64, 4
        $region16: #{tpu_custom_call.1} parent=11 // pred_fallthru
          _
        // Predicated region
        $region17: #{tpu_custom_call.1} parent=11 // pred_check
          %p362 = pneg %p138
        $region18: #{tpu_custom_call.1} parent=11 // pred_check_branch
          %364 = sbr.rel (%p362) target = $region20
        $region19: #{tpu_custom_call.1} parent=11 // pred_region
          %s366 = ssub.s32 16, 16
          %367 = vsyncadd [#allocation11], %s366
          %s369 = sshll.u32 [#allocation10], 4
          %s370 = int_to_ptr.vmem [resolvable:$true] %s369
          %372 = dma.hbm_to_vmem [thread:$0]  %s3, 16, %s370, [#allocation11]
        $region20: #{tpu_custom_call.1} parent=11 // pred_fallthru
          _
        // Predicated region
        $region21: #{tpu_custom_call.1} parent=11 // pred_check
          %p373 = pneg %p159
        $region22: #{tpu_custom_call.1} parent=11 // pred_check_branch
          %375 = sbr.rel (%p373) target = $region24
        $region23: #{tpu_custom_call.1} parent=11 // pred_region
          %s377 = ssub.s32 256, 256
          %378 = vsyncadd [#allocation11], %s377
          %s379 = sshll.u32 [#allocation12], 4
          %s380 = int_to_ptr.vmem [resolvable:$true] %s379
          %385 = dma.hbm_to_vmem [thread:$0]  %s4, 256, %s380, [#allocation11], 64, 64, 4
        $region24: #{tpu_custom_call.1} parent=11 // pred_fallthru
          _
        // Predicated region
        $region25: #{tpu_custom_call.1} parent=11 // pred_check
          %p386 = pneg %p180
        $region26: #{tpu_custom_call.1} parent=11 // pred_check_branch
          %388 = sbr.rel (%p386) target = $region28
        $region27: #{tpu_custom_call.1} parent=11 // pred_region
          %s390 = ssub.s32 16, 16
          %391 = vsyncadd [#allocation14], %s390
          %s393 = sshll.u32 [#allocation13], 4
          %s394 = int_to_ptr.vmem [resolvable:$true] %s393
          %396 = dma.hbm_to_vmem [thread:$0]  %s5, 16, %s394, [#allocation14]
        $region28: #{tpu_custom_call.1} parent=11 // pred_fallthru
          _
        // Predicated region
        $region29: #{tpu_custom_call.1} parent=11 // pred_check
          %p397 = pneg %p201
        $region30: #{tpu_custom_call.1} parent=11 // pred_check_branch
          %399 = sbr.rel (%p397) target = $region32
        $region31: #{tpu_custom_call.1} parent=11 // pred_region
          %s401 = ssub.s32 256, 256
          %402 = vsyncadd [#allocation14], %s401
          %s403 = sshll.u32 [#allocation15], 4
          %s404 = int_to_ptr.vmem [resolvable:$true] %s403
          %409 = dma.hbm_to_vmem [thread:$0]  %s6, 256, %s404, [#allocation14], 64, 64, 4
        $region32: #{tpu_custom_call.1} parent=11 // pred_fallthru
          _
        // Predicated region
        $region33: #{tpu_custom_call.1} parent=11 // pred_check
          %p410 = pneg %p222
        $region34: #{tpu_custom_call.1} parent=11 // pred_check_branch
          %412 = sbr.rel (%p410) target = $region36
        $region35: #{tpu_custom_call.1} parent=11 // pred_region
          %s414 = ssub.s32 16, 16
          %415 = vsyncadd [#allocation17], %s414
          %s417 = sshll.u32 [#allocation16], 4
          %s418 = int_to_ptr.vmem [resolvable:$true] %s417
          %420 = dma.hbm_to_vmem [thread:$0]  %s7, 16, %s418, [#allocation17]
        $region36: #{tpu_custom_call.1} parent=11 // pred_fallthru
          _
        // Predicated region
        $region37: #{tpu_custom_call.1} parent=11 // pred_check
          %p421 = pneg %p243
        $region38: #{tpu_custom_call.1} parent=11 // pred_check_branch
          %423 = sbr.rel (%p421) target = $region40
        $region39: #{tpu_custom_call.1} parent=11 // pred_region
          %s425 = ssub.s32 256, 256
          %426 = vsyncadd [#allocation17], %s425
          %s427 = sshll.u32 [#allocation18], 4
          %s428 = int_to_ptr.vmem [resolvable:$true] %s427
          %433 = dma.hbm_to_vmem [thread:$0]  %s8, 256, %s428, [#allocation17], 64, 64, 4
        $region40: #{tpu_custom_call.1} parent=11 // pred_fallthru
          _
        // Predicated region
        $region41: #{tpu_custom_call.1} parent=11 // pred_check
          %p434 = pneg %p264
        $region42: #{tpu_custom_call.1} parent=11 // pred_check_branch
          %436 = sbr.rel (%p434) target = $region44
        $region43: #{tpu_custom_call.1} parent=11 // pred_region
          %s438 = ssub.s32 16, 16
          %439 = vsyncadd [#allocation20], %s438
          %s441 = sshll.u32 [#allocation19], 4
          %s442 = int_to_ptr.vmem [resolvable:$true] %s441
          %444 = dma.hbm_to_vmem [thread:$0]  %s9, 16, %s442, [#allocation20]
        $region44: #{tpu_custom_call.1} parent=11 // pred_fallthru
          _
        // Predicated region
        $region45: #{tpu_custom_call.1} parent=11 // pred_check
          %p445 = pneg %p285
        $region46: #{tpu_custom_call.1} parent=11 // pred_check_branch
          %447 = sbr.rel (%p445) target = $region48
        $region47: #{tpu_custom_call.1} parent=11 // pred_region
          %s449 = ssub.s32 16, 16
          %450 = vsyncadd [#allocation20], %s449
          %s452 = sshll.u32 [#allocation21], 4
          %s453 = int_to_ptr.vmem [resolvable:$true] %s452
          %455 = dma.hbm_to_vmem [thread:$0]  %s10, 16, %s453, [#allocation20]
        $region48: #{tpu_custom_call.1} parent=11 // pred_fallthru
          _
        // Predicated region
        $region49: #{tpu_custom_call.1} parent=11 // pred_check
          %p456 = pneg %p306
        $region50: #{tpu_custom_call.1} parent=11 // pred_check_branch
          %458 = sbr.rel (%p456) target = $region52
        $region51: #{tpu_custom_call.1} parent=11 // pred_region
          %s460 = ssub.s32 16, 16
          %461 = vsyncadd [#allocation23], %s460
          %s463 = sshll.u32 [#allocation22], 4
          %s464 = int_to_ptr.vmem [resolvable:$true] %s463
          %466 = dma.hbm_to_vmem [thread:$0]  %s11, 16, %s464, [#allocation23]
        $region52: #{tpu_custom_call.1} parent=11 // pred_fallthru
          _
      $region12: #{tpu_custom_call.1} parent=5 // pred_fallthru
        _
      %p467 = scmp.lt.s32.totalorder %s32, 2
      // Predicated region
      $region53: #{tpu_custom_call.1} parent=5 // pred_check
        %p468 = pneg %p467
      $region54: #{tpu_custom_call.1} parent=5 // pred_check_branch
        %470 = sbr.rel (%p468) target = $region56
      $region55: #{tpu_custom_call.1} parent=5 // pred_region
        // Predicated region
        $region57: #{tpu_custom_call.1} parent=55 // pred_check
          %p471 = pneg %p64
        $region58: #{tpu_custom_call.1} parent=55 // pred_check_branch
          %473 = sbr.rel (%p471) target = $region60
        $region59: #{tpu_custom_call.1} parent=55 // pred_region
          %s474 = sand.u32 %s54, 1
          %s475 = scalar_lea.sflag [#allocation5], %s474
          %s476 = sand.u32 %s54, 1
          %s477 = smul.addr %s476, 8
          %s478 = scalar_lea.vmem [#allocation4], %s477
          %s480 = ssub.s32 128, 128
          %481 = vsyncadd %s475, %s480
          %s482 = smul.addr %s39, 128
          %s483 = scalar_lea.hbm %s0, %s482
          %s485 = sshll.u32 %s478, 4
          %s486 = int_to_ptr.vmem [resolvable:$true] %s485
          %488 = dma.hbm_to_vmem [thread:$0]  %s483, 128, %s486, %s475
        $region60: #{tpu_custom_call.1} parent=55 // pred_fallthru
          _
        // Predicated region
        $region61: #{tpu_custom_call.1} parent=55 // pred_check
          %p489 = pneg %p90
        $region62: #{tpu_custom_call.1} parent=55 // pred_check_branch
          %491 = sbr.rel (%p489) target = $region64
        $region63: #{tpu_custom_call.1} parent=55 // pred_region
          %s492 = sand.u32 %s32, 1
          %s493 = scalar_lea.sflag [#allocation8], %s492
          %s494 = sand.u32 %s80, 1
          %s495 = scalar_lea.vmem [#allocation7], %s494
          %s497 = ssub.s32 16, 16
          %498 = vsyncadd %s493, %s497
          %s499 = smul.addr %s39, 16
          %s500 = scalar_lea.hbm %s1, %s499
          %s502 = sshll.u32 %s495, 4
          %s503 = int_to_ptr.vmem [resolvable:$true] %s502
          %505 = dma.hbm_to_vmem [thread:$0]  %s500, 16, %s503, %s493
        $region64: #{tpu_custom_call.1} parent=55 // pred_fallthru
          _
      $region56: #{tpu_custom_call.1} parent=5 // pred_fallthru
        _
      %p506 = scmp.le.s32.totalorder 1, %s32
      %p507 = scmp.lt.s32.totalorder %s32, 3
      %p508 = pnand %p506, %p507
      %p509 = pneg %p508
      // Predicated region
      $region65: #{tpu_custom_call.1} parent=5 // pred_check
        _
      $region66: #{tpu_custom_call.1} parent=5 // pred_check_branch
        %511 = sbr.rel (%p508) target = $region68
      $region67: #{tpu_custom_call.1} parent=5 // pred_region
        %s512 = ssub.s32 %s32, 1
        %s513 = sand.u32 %s57, 1
        %s514 = scalar_lea.sflag [#allocation5], %s513
        %s515 = sand.u32 %s57, 1
        %s516 = smul.addr %s515, 8
        %s517 = scalar_lea.vmem [#allocation4], %s516
        // Predicated region
        $region69: #{tpu_custom_call.1} parent=67 // pred_check
          %p518 = pneg %p70
        $region70: #{tpu_custom_call.1} parent=67 // pred_check_branch
          %520 = sbr.rel (%p518) target = $region72
        $region71: #{tpu_custom_call.1} parent=67 // pred_region
          %521 = dma.done %s514, 128
        $region72: #{tpu_custom_call.1} parent=67 // pred_fallthru
          _
        %s522 = sand.u32 %s37, 1
        %s523 = scalar_lea.sflag [#allocation8], %s522
        %s524 = sand.u32 %s83, 1
        %s525 = scalar_lea.vmem [#allocation7], %s524
        // Predicated region
        $region73: #{tpu_custom_call.1} parent=67 // pred_check
          %p526 = pneg %p96
        $region74: #{tpu_custom_call.1} parent=67 // pred_check_branch
          %528 = sbr.rel (%p526) target = $region76
        $region75: #{tpu_custom_call.1} parent=67 // pred_region
          %529 = dma.done %s523, 16
        $region76: #{tpu_custom_call.1} parent=67 // pred_fallthru
          _
        // Predicated region
        $region77: #{tpu_custom_call.1} parent=67 // pred_check
          %p530 = pneg %p117
        $region78: #{tpu_custom_call.1} parent=67 // pred_check_branch
          %532 = sbr.rel (%p530) target = $region80
        $region79: #{tpu_custom_call.1} parent=67 // pred_region
          %533 = dma.done [#allocation8], 256
        $region80: #{tpu_custom_call.1} parent=67 // pred_fallthru
          _
        // Predicated region
        $region81: #{tpu_custom_call.1} parent=67 // pred_check
          %p534 = pneg %p138
        $region82: #{tpu_custom_call.1} parent=67 // pred_check_branch
          %536 = sbr.rel (%p534) target = $region84
        $region83: #{tpu_custom_call.1} parent=67 // pred_region
          %537 = dma.done [#allocation11], 16
        $region84: #{tpu_custom_call.1} parent=67 // pred_fallthru
          _
        // Predicated region
        $region85: #{tpu_custom_call.1} parent=67 // pred_check
          %p538 = pneg %p159
        $region86: #{tpu_custom_call.1} parent=67 // pred_check_branch
          %540 = sbr.rel (%p538) target = $region88
        $region87: #{tpu_custom_call.1} parent=67 // pred_region
          %541 = dma.done [#allocation11], 256
        $region88: #{tpu_custom_call.1} parent=67 // pred_fallthru
          _
        // Predicated region
        $region89: #{tpu_custom_call.1} parent=67 // pred_check
          %p542 = pneg %p180
        $region90: #{tpu_custom_call.1} parent=67 // pred_check_branch
          %544 = sbr.rel (%p542) target = $region92
        $region91: #{tpu_custom_call.1} parent=67 // pred_region
          %545 = dma.done [#allocation14], 16
        $region92: #{tpu_custom_call.1} parent=67 // pred_fallthru
          _
        // Predicated region
        $region93: #{tpu_custom_call.1} parent=67 // pred_check
          %p546 = pneg %p201
        $region94: #{tpu_custom_call.1} parent=67 // pred_check_branch
          %548 = sbr.rel (%p546) target = $region96
        $region95: #{tpu_custom_call.1} parent=67 // pred_region
          %549 = dma.done [#allocation14], 256
        $region96: #{tpu_custom_call.1} parent=67 // pred_fallthru
          _
        // Predicated region
        $region97: #{tpu_custom_call.1} parent=67 // pred_check
          %p550 = pneg %p222
        $region98: #{tpu_custom_call.1} parent=67 // pred_check_branch
          %552 = sbr.rel (%p550) target = $region100
        $region99: #{tpu_custom_call.1} parent=67 // pred_region
          %553 = dma.done [#allocation17], 16
        $region100: #{tpu_custom_call.1} parent=67 // pred_fallthru
          _
        // Predicated region
        $region101: #{tpu_custom_call.1} parent=67 // pred_check
          %p554 = pneg %p243
        $region102: #{tpu_custom_call.1} parent=67 // pred_check_branch
          %556 = sbr.rel (%p554) target = $region104
        $region103: #{tpu_custom_call.1} parent=67 // pred_region
          %557 = dma.done [#allocation17], 256
        $region104: #{tpu_custom_call.1} parent=67 // pred_fallthru
          _
        // Predicated region
        $region105: #{tpu_custom_call.1} parent=67 // pred_check
          %p558 = pneg %p264
        $region106: #{tpu_custom_call.1} parent=67 // pred_check_branch
          %560 = sbr.rel (%p558) target = $region108
        $region107: #{tpu_custom_call.1} parent=67 // pred_region
          %561 = dma.done [#allocation20], 16
        $region108: #{tpu_custom_call.1} parent=67 // pred_fallthru
          _
        // Predicated region
        $region109: #{tpu_custom_call.1} parent=67 // pred_check
          %p562 = pneg %p285
        $region110: #{tpu_custom_call.1} parent=67 // pred_check_branch
          %564 = sbr.rel (%p562) target = $region112
        $region111: #{tpu_custom_call.1} parent=67 // pred_region
          %565 = dma.done [#allocation20], 16
        $region112: #{tpu_custom_call.1} parent=67 // pred_fallthru
          _
        // Predicated region
        $region113: #{tpu_custom_call.1} parent=67 // pred_check
          %p566 = pneg %p306
        $region114: #{tpu_custom_call.1} parent=67 // pred_check_branch
          %568 = sbr.rel (%p566) target = $region116
        $region115: #{tpu_custom_call.1} parent=67 // pred_region
          %569 = dma.done [#allocation23], 16
        $region116: #{tpu_custom_call.1} parent=67 // pred_fallthru
          _
        %s570 = sand.u32 %s57, 1
        %s571 = scalar_lea.sflag [#allocation5], %s570
        %s572 = sand.u32 %s57, 1
        %s573 = smul.addr %s572, 8
        %s574 = scalar_lea.vmem [#allocation4], %s573
        %p575 = pneg %p70
        %p576 = pneg %p67
        %s577 = sand.u32 %s37, 1
        %s578 = scalar_lea.sflag [#allocation8], %s577
        %s579 = sand.u32 %s83, 1
        %s580 = scalar_lea.vmem [#allocation7], %s579
        %p581 = pneg %p96
        %p582 = pneg %p93
        %p583 = pneg %p117
        %p584 = pneg %p114
        %p585 = pneg %p138
        %p586 = pneg %p135
        %p587 = pneg %p159
        %p588 = pneg %p156
        %p589 = pneg %p180
        %p590 = pneg %p177
        %p591 = pneg %p201
        %p592 = pneg %p198
        %p593 = pneg %p222
        %p594 = pneg %p219
        %p595 = pneg %p243
        %p596 = pneg %p240
        %p597 = pneg %p264
        %p598 = pneg %p261
        %p599 = pneg %p285
        %p600 = pneg %p282
        %p601 = pneg %p306
        %p602 = pneg %p303
        %p603 = pneg %p334
        %p604 = pneg %p331
        %s605 = sand.u32 %s321, 1
        %s606 = scalar_lea.sflag [#allocation6], %s605
        %s607 = sand.u32 %s321, 1
        %s608 = smul.addr %s607, 8
        %s609 = scalar_lea.vmem [#allocation24], %s608
        %p611 = scmp.eq.s32.totalorder %s42, 0
        // Predicated region
        $region117: #{tpu_custom_call.1} parent=67 // pred_check
          %p612 = pneg %p611
        $region118: #{tpu_custom_call.1} parent=67 // pred_check_branch
          %614 = sbr.rel (%p612) target = $region120
        $region119: #{tpu_custom_call.1} parent=67 // pred_region
          %v615 = vld [vmem:[%s517] sm:$0xff]
          %v616 = vpack.c.bf16 %v615, %v615
          %v617 = vld [vmem:[#allocation12] sm:$0xf]
          %v618 = vld [vmem:[#allocation12 + $0x4] sm:$0xf]
          %v619 = vld [vmem:[#allocation12 + $0x8] sm:$0xf]
          %v620 = vld [vmem:[#allocation12 + $0xc] sm:$0xf]
          %v621 = vld [vmem:[#allocation13] sm:$0x1]
          %v623 = vlaneseq
          %v624 = vshrl.u32 %v623, 7
          %v625 = vsub.s32 0, %v624
          %v626 = vrot.slane %v621, %v625
          %v632 = vunpack.c.l.b16 %v617
          %v633 = vunpack.c.l.b16 %v618
          %v634 = vunpack.c.l.b16 %v619
          %v635 = vunpack.c.l.b16 %v620
          %v636 = vpack.c.b16 %v633, %v632
          %v637 = vpack.c.b16 %v635, %v634
          %vm640 = vcmask 261120
          %v642 = vsel %vm640, %v616, 0
          %644 = vmatprep.subr.bf16.mxu0 0
          %645 = vmatpush1.bf16.msra.mxu0 %v636
          %646 = vmatprep.subr.bf16.mxu0 0
          %647 = vmatpush1.bf16.msra.mxu0 %v637
          %648 = vmatprep.subr.bf16.mxu0 0
          %649 = vmatpush1.bf16.msra.mxu0 0
          %650 = vmatprep.subr.bf16.mxu0 0
          %651 = vmatpush1.bf16.msra.mxu0 0
          %652 = vmatprep.subr.bf16.mxu0 0
          %653 = vmatpush1.bf16.msra.mxu0 0
          %654 = vmatprep.subr.bf16.mxu0 0
          %655 = vmatpush1.bf16.msra.mxu0 0
          %656 = vmatprep.subr.bf16.mxu0 0
          %657 = vmatpush1.bf16.msra.mxu0 0
          %658 = vmatprep.subr.bf16.mxu0 0
          %659 = vmatpush1.bf16.msra.mxu0 0
          %660 = vmatprep.subr.bf16.mxu0 0
          %661 = vmatpush1.bf16.msra.mxu0 0
          %662 = vmatprep.subr.bf16.mxu0 0
          %663 = vmatpush1.bf16.msra.mxu0 0
          %664 = vmatprep.subr.bf16.mxu0 0
          %665 = vmatpush1.bf16.msra.mxu0 0
          %666 = vmatprep.subr.bf16.mxu0 0
          %667 = vmatpush1.bf16.msra.mxu0 0
          %668 = vmatprep.subr.bf16.mxu0 0
          %669 = vmatpush1.bf16.msra.mxu0 0
          %670 = vmatprep.subr.bf16.mxu0 0
          %671 = vmatpush1.bf16.msra.mxu0 0
          %672 = vmatprep.subr.bf16.mxu0 0
          %673 = vmatpush1.bf16.msra.mxu0 0
          %674 = vmatprep.subr.bf16.mxu0 0
          %675 = vmatpush1.bf16.msra.mxu0 0
          %676 = vmatprep.mubr.bf16.mxu0 0
          %677 = vmatmul.mubr.bf16.gmra.mrb[0].mxu0 %v642
          %v678 = vpop.f32.mrb[0].mxu0
          %v679 = vadd.f32 %v626, %v678
          %v680 = vpop.f32.mrb[0].mxu0
          %v681 = vpop.f32.mrb[0].mxu0
          %v682 = vpop.f32.mrb[0].mxu0
          %683 = vdwg.mxu0
          %v684 = vld [vmem:[#allocation15] sm:$0xf]
          %v685 = vld [vmem:[#allocation15 + $0x4] sm:$0xf]
          %v686 = vld [vmem:[#allocation15 + $0x8] sm:$0xf]
          %v687 = vld [vmem:[#allocation15 + $0xc] sm:$0xf]
          %v688 = vld [vmem:[#allocation16] sm:$0x1]
          %v690 = vlaneseq
          %v691 = vshrl.u32 %v690, 7
          %v692 = vsub.s32 0, %v691
          %v693 = vrot.slane %v688, %v692
          %v699 = vunpack.c.l.b16 %v684
          %v700 = vunpack.c.l.b16 %v685
          %v701 = vunpack.c.l.b16 %v686
          %v702 = vunpack.c.l.b16 %v687
          %v703 = vpack.c.b16 %v700, %v699
          %v704 = vpack.c.b16 %v702, %v701
          %707 = vmatprep.subr.bf16.mxu0 0
          %708 = vmatpush1.bf16.msra.mxu0 %v703
          %709 = vmatprep.subr.bf16.mxu0 0
          %710 = vmatpush1.bf16.msra.mxu0 %v704
          %711 = vmatprep.subr.bf16.mxu0 0
          %712 = vmatpush1.bf16.msra.mxu0 0
          %713 = vmatprep.subr.bf16.mxu0 0
          %714 = vmatpush1.bf16.msra.mxu0 0
          %715 = vmatprep.subr.bf16.mxu0 0
          %716 = vmatpush1.bf16.msra.mxu0 0
          %717 = vmatprep.subr.bf16.mxu0 0
          %718 = vmatpush1.bf16.msra.mxu0 0
          %719 = vmatprep.subr.bf16.mxu0 0
          %720 = vmatpush1.bf16.msra.mxu0 0
          %721 = vmatprep.subr.bf16.mxu0 0
          %722 = vmatpush1.bf16.msra.mxu0 0
          %723 = vmatprep.subr.bf16.mxu0 0
          %724 = vmatpush1.bf16.msra.mxu0 0
          %725 = vmatprep.subr.bf16.mxu0 0
          %726 = vmatpush1.bf16.msra.mxu0 0
          %727 = vmatprep.subr.bf16.mxu0 0
          %728 = vmatpush1.bf16.msra.mxu0 0
          %729 = vmatprep.subr.bf16.mxu0 0
          %730 = vmatpush1.bf16.msra.mxu0 0
          %731 = vmatprep.subr.bf16.mxu0 0
          %732 = vmatpush1.bf16.msra.mxu0 0
          %733 = vmatprep.subr.bf16.mxu0 0
          %734 = vmatpush1.bf16.msra.mxu0 0
          %735 = vmatprep.subr.bf16.mxu0 0
          %736 = vmatpush1.bf16.msra.mxu0 0
          %737 = vmatprep.subr.bf16.mxu0 0
          %738 = vmatpush1.bf16.msra.mxu0 0
          %739 = vmatprep.mubr.bf16.mxu0 0
          %740 = vmatmul.mubr.bf16.gmra.mrb[0].mxu0 %v642
          %v741 = vpop.f32.mrb[0].mxu0
          %v742 = vadd.f32 %v693, %v741
          %v743 = vpop.f32.mrb[0].mxu0
          %v744 = vpop.f32.mrb[0].mxu0
          %v745 = vpop.f32.mrb[0].mxu0
          %746 = vdwg.mxu0
          %748 = vrot.lane.b32.xlu0 %v679, 120
          %v749 = vpop.permute.xlu0 %748
          %751 = vrot.lane.b32.xlu0 %v679, 112
          %v752 = vpop.permute.xlu0 %751
          %754 = vrot.lane.b32.xlu0 %v679, 104
          %v755 = vpop.permute.xlu0 %754
          %v757 = vcombine.low %v679, %v752
          %v758 = vcombine.high %v679, %v752
          %v760 = vunpack.c.l.s4 1983009808
          %v761 = vunpack.c.0.s8 %v760
          %v762 = vlaneseq
          %v763 = vshrl.u32 %v762, 7
          %v764 = vsub.s32 %v761, %v763
          %v765 = vrot.slane %v757, %v764
          %v767 = vunpack.c.l.s4 1983009808
          %v768 = vunpack.c.0.s8 %v767
          %v769 = vlaneseq
          %v770 = vshrl.u32 %v769, 7
          %v771 = vsub.s32 %v768, %v770
          %v772 = vrot.slane %v758, %v771
          %v773 = vcombine.low %v749, %v755
          %v774 = vcombine.high %v749, %v755
          %v776 = vunpack.c.l.s4 1983009808
          %v777 = vunpack.c.0.s8 %v776
          %v778 = vlaneseq
          %v779 = vshrl.u32 %v778, 7
          %v780 = vsub.s32 %v777, %v779
          %v781 = vrot.slane %v773, %v780
          %v783 = vunpack.c.l.s4 1983009808
          %v784 = vunpack.c.0.s8 %v783
          %v785 = vlaneseq
          %v786 = vshrl.u32 %v785, 7
          %v787 = vsub.s32 %v784, %v786
          %v788 = vrot.slane %v774, %v787
          %v789 = vcombine.low %v765, %v781
          %v790 = vcombine.high %v765, %v781
          %v792 = vunpack.c.l.s4 1934713408
          %v793 = vunpack.c.0.s8 %v792
          %v794 = vlaneseq
          %v795 = vshrl.u32 %v794, 7
          %v796 = vsub.s32 %v793, %v795
          %v797 = vrot.slane %v789, %v796
          %v799 = vunpack.c.l.s4 1934713408
          %v800 = vunpack.c.0.s8 %v799
          %v801 = vlaneseq
          %v802 = vshrl.u32 %v801, 7
          %v803 = vsub.s32 %v800, %v802
          %v804 = vrot.slane %v790, %v803
          %v805 = vcombine.low %v772, %v788
          %v806 = vcombine.high %v772, %v788
          %v808 = vunpack.c.l.s4 1934713408
          %v809 = vunpack.c.0.s8 %v808
          %v810 = vlaneseq
          %v811 = vshrl.u32 %v810, 7
          %v812 = vsub.s32 %v809, %v811
          %v813 = vrot.slane %v805, %v812
          %v815 = vunpack.c.l.s4 1934713408
          %v816 = vunpack.c.0.s8 %v815
          %v817 = vlaneseq
          %v818 = vshrl.u32 %v817, 7
          %v819 = vsub.s32 %v816, %v818
          %v820 = vrot.slane %v806, %v819
          %v821 = vcombine.high %v797, 0.0
          %v822 = vcombine.high %v804, 0.0
          %v823 = vcombine.high %v813, 0.0
          %v824 = vcombine.high %v820, 0.0
          %v825 = vcombine.low %v797, %v804
          %v827 = vunpack.c.l.s4 1983009808
          %v828 = vunpack.c.0.s8 %v827
          %v829 = vlaneseq
          %v830 = vshrl.u32 %v829, 7
          %v831 = vsub.s32 %v828, %v830
          %v832 = vrot.slane %v825, %v831
          %v833 = vcombine.low %v821, %v822
          %v835 = vunpack.c.l.s4 1983009808
          %v836 = vunpack.c.0.s8 %v835
          %v837 = vlaneseq
          %v838 = vshrl.u32 %v837, 7
          %v839 = vsub.s32 %v836, %v838
          %v840 = vrot.slane %v833, %v839
          %v841 = vcombine.low %v813, %v820
          %v843 = vunpack.c.l.s4 1983009808
          %v844 = vunpack.c.0.s8 %v843
          %v845 = vlaneseq
          %v846 = vshrl.u32 %v845, 7
          %v847 = vsub.s32 %v844, %v846
          %v848 = vrot.slane %v841, %v847
          %v849 = vcombine.low %v823, %v824
          %v851 = vunpack.c.l.s4 1983009808
          %v852 = vunpack.c.0.s8 %v851
          %v853 = vlaneseq
          %v854 = vshrl.u32 %v853, 7
          %v855 = vsub.s32 %v852, %v854
          %v856 = vrot.slane %v849, %v855
          %v857 = vcombine.low %v832, %v840
          %v858 = vcombine.high %v832, %v840
          %v860 = vunpack.c.l.s4 1934713408
          %v861 = vunpack.c.0.s8 %v860
          %v862 = vlaneseq
          %v863 = vshrl.u32 %v862, 7
          %v864 = vsub.s32 %v861, %v863
          %v865 = vrot.slane %v857, %v864
          %v867 = vunpack.c.l.s4 1934713408
          %v868 = vunpack.c.0.s8 %v867
          %v869 = vlaneseq
          %v870 = vshrl.u32 %v869, 7
          %v871 = vsub.s32 %v868, %v870
          %v872 = vrot.slane %v858, %v871
          %v873 = vcombine.low %v848, %v856
          %v874 = vcombine.high %v848, %v856
          %v876 = vunpack.c.l.s4 1934713408
          %v877 = vunpack.c.0.s8 %v876
          %v878 = vlaneseq
          %v879 = vshrl.u32 %v878, 7
          %v880 = vsub.s32 %v877, %v879
          %v881 = vrot.slane %v873, %v880
          %v883 = vunpack.c.l.s4 1934713408
          %v884 = vunpack.c.0.s8 %v883
          %v885 = vlaneseq
          %v886 = vshrl.u32 %v885, 7
          %v887 = vsub.s32 %v884, %v886
          %v888 = vrot.slane %v874, %v887
          %v889 = vcombine.low %v865, %v881
          %v890 = vcombine.high %v865, %v881
          %v891 = vcombine.low %v872, %v888
          %v892 = vcombine.high %v872, %v888
          %893 = vxpose.xlu0.b32.start [1/16] %v889, 128
          %894 = vxpose.xlu0.b32.cont [2/16] 0.0, 128
          %895 = vxpose.xlu0.b32.cont [3/16] 0.0, 128
          %896 = vxpose.xlu0.b32.cont [4/16] 0.0, 128
          %897 = vxpose.xlu0.b32.cont [5/16] 0.0, 128
          %898 = vxpose.xlu0.b32.cont [6/16] 0.0, 128
          %899 = vxpose.xlu0.b32.cont [7/16] 0.0, 128
          %900 = vxpose.xlu0.b32.cont [8/16] 0.0, 128
          %901 = vxpose.xlu0.b32.cont [9/16] 0.0, 128
          %902 = vxpose.xlu0.b32.cont [10/16] 0.0, 128
          %903 = vxpose.xlu0.b32.cont [11/16] 0.0, 128
          %904 = vxpose.xlu0.b32.cont [12/16] 0.0, 128
          %905 = vxpose.xlu0.b32.cont [13/16] 0.0, 128
          %906 = vxpose.xlu0.b32.cont [14/16] 0.0, 128
          %907 = vxpose.xlu0.b32.cont [15/16] 0.0, 128
          %908 = vxpose.xlu0.b32.end [16/16] 0.0, 128
          %v909 = vpop.trf.xlu0
          %v910 = vpop.trf.xlu0
          %v911 = vpop.trf.xlu0
          %v912 = vpop.trf.xlu0
          %v913 = vpop.trf.xlu0
          %v914 = vpop.trf.xlu0
          %v915 = vpop.trf.xlu0
          %v916 = vpop.trf.xlu0
          %v917 = vpop.trf.xlu0
          %v918 = vpop.trf.xlu0
          %v919 = vpop.trf.xlu0
          %v920 = vpop.trf.xlu0
          %v921 = vpop.trf.xlu0
          %v922 = vpop.trf.xlu0
          %v923 = vpop.trf.xlu0
          %v924 = vpop.trf.xlu0
          %925 = vxpose.xlu0.b32.start [1/16] %v890, 128
          %926 = vxpose.xlu0.b32.cont [2/16] 0.0, 128
          %927 = vxpose.xlu0.b32.cont [3/16] 0.0, 128
          %928 = vxpose.xlu0.b32.cont [4/16] 0.0, 128
          %929 = vxpose.xlu0.b32.cont [5/16] 0.0, 128
          %930 = vxpose.xlu0.b32.cont [6/16] 0.0, 128
          %931 = vxpose.xlu0.b32.cont [7/16] 0.0, 128
          %932 = vxpose.xlu0.b32.cont [8/16] 0.0, 128
          %933 = vxpose.xlu0.b32.cont [9/16] 0.0, 128
          %934 = vxpose.xlu0.b32.cont [10/16] 0.0, 128
          %935 = vxpose.xlu0.b32.cont [11/16] 0.0, 128
          %936 = vxpose.xlu0.b32.cont [12/16] 0.0, 128
          %937 = vxpose.xlu0.b32.cont [13/16] 0.0, 128
          %938 = vxpose.xlu0.b32.cont [14/16] 0.0, 128
          %939 = vxpose.xlu0.b32.cont [15/16] 0.0, 128
          %940 = vxpose.xlu0.b32.end [16/16] 0.0, 128
          %v941 = vpop.trf.xlu0
          %v942 = vpop.trf.xlu0
          %v943 = vpop.trf.xlu0
          %v944 = vpop.trf.xlu0
          %v945 = vpop.trf.xlu0
          %v946 = vpop.trf.xlu0
          %v947 = vpop.trf.xlu0
          %v948 = vpop.trf.xlu0
          %v949 = vpop.trf.xlu0
          %v950 = vpop.trf.xlu0
          %v951 = vpop.trf.xlu0
          %v952 = vpop.trf.xlu0
          %v953 = vpop.trf.xlu0
          %v954 = vpop.trf.xlu0
          %v955 = vpop.trf.xlu0
          %v956 = vpop.trf.xlu0
          %957 = vxpose.xlu0.b32.start [1/16] %v891, 128
          %958 = vxpose.xlu0.b32.cont [2/16] 0.0, 128
          %959 = vxpose.xlu0.b32.cont [3/16] 0.0, 128
          %960 = vxpose.xlu0.b32.cont [4/16] 0.0, 128
          %961 = vxpose.xlu0.b32.cont [5/16] 0.0, 128
          %962 = vxpose.xlu0.b32.cont [6/16] 0.0, 128
          %963 = vxpose.xlu0.b32.cont [7/16] 0.0, 128
          %964 = vxpose.xlu0.b32.cont [8/16] 0.0, 128
          %965 = vxpose.xlu0.b32.cont [9/16] 0.0, 128
          %966 = vxpose.xlu0.b32.cont [10/16] 0.0, 128
          %967 = vxpose.xlu0.b32.cont [11/16] 0.0, 128
          %968 = vxpose.xlu0.b32.cont [12/16] 0.0, 128
          %969 = vxpose.xlu0.b32.cont [13/16] 0.0, 128
          %970 = vxpose.xlu0.b32.cont [14/16] 0.0, 128
          %971 = vxpose.xlu0.b32.cont [15/16] 0.0, 128
          %972 = vxpose.xlu0.b32.end [16/16] 0.0, 128
          %v973 = vpop.trf.xlu0
          %v974 = vpop.trf.xlu0
          %v975 = vpop.trf.xlu0
          %v976 = vpop.trf.xlu0
          %v977 = vpop.trf.xlu0
          %v978 = vpop.trf.xlu0
          %v979 = vpop.trf.xlu0
          %v980 = vpop.trf.xlu0
          %v981 = vpop.trf.xlu0
          %v982 = vpop.trf.xlu0
          %v983 = vpop.trf.xlu0
          %v984 = vpop.trf.xlu0
          %v985 = vpop.trf.xlu0
          %v986 = vpop.trf.xlu0
          %v987 = vpop.trf.xlu0
          %v988 = vpop.trf.xlu0
          %989 = vxpose.xlu0.b32.start [1/16] %v892, 128
          %990 = vxpose.xlu0.b32.cont [2/16] 0.0, 128
          %991 = vxpose.xlu0.b32.cont [3/16] 0.0, 128
          %992 = vxpose.xlu0.b32.cont [4/16] 0.0, 128
          %993 = vxpose.xlu0.b32.cont [5/16] 0.0, 128
          %994 = vxpose.xlu0.b32.cont [6/16] 0.0, 128
          %995 = vxpose.xlu0.b32.cont [7/16] 0.0, 128
          %996 = vxpose.xlu0.b32.cont [8/16] 0.0, 128
          %997 = vxpose.xlu0.b32.cont [9/16] 0.0, 128
          %998 = vxpose.xlu0.b32.cont [10/16] 0.0, 128
          %999 = vxpose.xlu0.b32.cont [11/16] 0.0, 128
          %1000 = vxpose.xlu0.b32.cont [12/16] 0.0, 128
          %1001 = vxpose.xlu0.b32.cont [13/16] 0.0, 128
          %1002 = vxpose.xlu0.b32.cont [14/16] 0.0, 128
          %1003 = vxpose.xlu0.b32.cont [15/16] 0.0, 128
          %1004 = vxpose.xlu0.b32.end [16/16] 0.0, 128
          %v1005 = vpop.trf.xlu0
          %v1006 = vpop.trf.xlu0
          %v1007 = vpop.trf.xlu0
          %v1008 = vpop.trf.xlu0
          %v1009 = vpop.trf.xlu0
          %v1010 = vpop.trf.xlu0
          %v1011 = vpop.trf.xlu0
          %v1012 = vpop.trf.xlu0
          %v1013 = vpop.trf.xlu0
          %v1014 = vpop.trf.xlu0
          %v1015 = vpop.trf.xlu0
          %v1016 = vpop.trf.xlu0
          %v1017 = vpop.trf.xlu0
          %v1018 = vpop.trf.xlu0
          %v1019 = vpop.trf.xlu0
          %v1020 = vpop.trf.xlu0
          %v1021 = vpack.c.bf16 %v909, %v909
          %v1022 = vpack.c.bf16 %v941, %v941
          %v1023 = vpack.c.bf16 %v973, %v973
          %v1024 = vpack.c.bf16 %v1005, %v1005
          %vm1025 = vcmask 60416
          %1026 = vst.msk [vmem:[#allocation2] sm:$0xf] %vm1025, %v1021
          %1027 = vst.msk [vmem:[#allocation2 + $0x4] sm:$0xf] %vm1025, %v1022
          %1028 = vst.msk [vmem:[#allocation2 + $0x8] sm:$0xf] %vm1025, %v1023
          %1029 = vst.msk [vmem:[#allocation2 + $0xc] sm:$0xf] %vm1025, %v1024
          %1031 = vrot.lane.b32.xlu0 %v742, 120
          %v1032 = vpop.permute.xlu0 %1031
          %1034 = vrot.lane.b32.xlu0 %v742, 112
          %v1035 = vpop.permute.xlu0 %1034
          %1037 = vrot.lane.b32.xlu0 %v742, 104
          %v1038 = vpop.permute.xlu0 %1037
          %v1040 = vcombine.low %v742, %v1035
          %v1041 = vcombine.high %v742, %v1035
          %v1043 = vunpack.c.l.s4 1983009808
          %v1044 = vunpack.c.0.s8 %v1043
          %v1045 = vlaneseq
          %v1046 = vshrl.u32 %v1045, 7
          %v1047 = vsub.s32 %v1044, %v1046
          %v1048 = vrot.slane %v1040, %v1047
          %v1050 = vunpack.c.l.s4 1983009808
          %v1051 = vunpack.c.0.s8 %v1050
          %v1052 = vlaneseq
          %v1053 = vshrl.u32 %v1052, 7
          %v1054 = vsub.s32 %v1051, %v1053
          %v1055 = vrot.slane %v1041, %v1054
          %v1056 = vcombine.low %v1032, %v1038
          %v1057 = vcombine.high %v1032, %v1038
          %v1059 = vunpack.c.l.s4 1983009808
          %v1060 = vunpack.c.0.s8 %v1059
          %v1061 = vlaneseq
          %v1062 = vshrl.u32 %v1061, 7
          %v1063 = vsub.s32 %v1060, %v1062
          %v1064 = vrot.slane %v1056, %v1063
          %v1066 = vunpack.c.l.s4 1983009808
          %v1067 = vunpack.c.0.s8 %v1066
          %v1068 = vlaneseq
          %v1069 = vshrl.u32 %v1068, 7
          %v1070 = vsub.s32 %v1067, %v1069
          %v1071 = vrot.slane %v1057, %v1070
          %v1072 = vcombine.low %v1048, %v1064
          %v1073 = vcombine.high %v1048, %v1064
          %v1075 = vunpack.c.l.s4 1934713408
          %v1076 = vunpack.c.0.s8 %v1075
          %v1077 = vlaneseq
          %v1078 = vshrl.u32 %v1077, 7
          %v1079 = vsub.s32 %v1076, %v1078
          %v1080 = vrot.slane %v1072, %v1079
          %v1082 = vunpack.c.l.s4 1934713408
          %v1083 = vunpack.c.0.s8 %v1082
          %v1084 = vlaneseq
          %v1085 = vshrl.u32 %v1084, 7
          %v1086 = vsub.s32 %v1083, %v1085
          %v1087 = vrot.slane %v1073, %v1086
          %v1088 = vcombine.low %v1055, %v1071
          %v1089 = vcombine.high %v1055, %v1071
          %v1091 = vunpack.c.l.s4 1934713408
          %v1092 = vunpack.c.0.s8 %v1091
          %v1093 = vlaneseq
          %v1094 = vshrl.u32 %v1093, 7
          %v1095 = vsub.s32 %v1092, %v1094
          %v1096 = vrot.slane %v1088, %v1095
          %v1098 = vunpack.c.l.s4 1934713408
          %v1099 = vunpack.c.0.s8 %v1098
          %v1100 = vlaneseq
          %v1101 = vshrl.u32 %v1100, 7
          %v1102 = vsub.s32 %v1099, %v1101
          %v1103 = vrot.slane %v1089, %v1102
          %v1104 = vcombine.high %v1080, 0.0
          %v1105 = vcombine.high %v1087, 0.0
          %v1106 = vcombine.high %v1096, 0.0
          %v1107 = vcombine.high %v1103, 0.0
          %v1108 = vcombine.low %v1080, %v1087
          %v1110 = vunpack.c.l.s4 1983009808
          %v1111 = vunpack.c.0.s8 %v1110
          %v1112 = vlaneseq
          %v1113 = vshrl.u32 %v1112, 7
          %v1114 = vsub.s32 %v1111, %v1113
          %v1115 = vrot.slane %v1108, %v1114
          %v1116 = vcombine.low %v1104, %v1105
          %v1118 = vunpack.c.l.s4 1983009808
          %v1119 = vunpack.c.0.s8 %v1118
          %v1120 = vlaneseq
          %v1121 = vshrl.u32 %v1120, 7
          %v1122 = vsub.s32 %v1119, %v1121
          %v1123 = vrot.slane %v1116, %v1122
          %v1124 = vcombine.low %v1096, %v1103
          %v1126 = vunpack.c.l.s4 1983009808
          %v1127 = vunpack.c.0.s8 %v1126
          %v1128 = vlaneseq
          %v1129 = vshrl.u32 %v1128, 7
          %v1130 = vsub.s32 %v1127, %v1129
          %v1131 = vrot.slane %v1124, %v1130
          %v1132 = vcombine.low %v1106, %v1107
          %v1134 = vunpack.c.l.s4 1983009808
          %v1135 = vunpack.c.0.s8 %v1134
          %v1136 = vlaneseq
          %v1137 = vshrl.u32 %v1136, 7
          %v1138 = vsub.s32 %v1135, %v1137
          %v1139 = vrot.slane %v1132, %v1138
          %v1140 = vcombine.low %v1115, %v1123
          %v1141 = vcombine.high %v1115, %v1123
          %v1143 = vunpack.c.l.s4 1934713408
          %v1144 = vunpack.c.0.s8 %v1143
          %v1145 = vlaneseq
          %v1146 = vshrl.u32 %v1145, 7
          %v1147 = vsub.s32 %v1144, %v1146
          %v1148 = vrot.slane %v1140, %v1147
          %v1150 = vunpack.c.l.s4 1934713408
          %v1151 = vunpack.c.0.s8 %v1150
          %v1152 = vlaneseq
          %v1153 = vshrl.u32 %v1152, 7
          %v1154 = vsub.s32 %v1151, %v1153
          %v1155 = vrot.slane %v1141, %v1154
          %v1156 = vcombine.low %v1131, %v1139
          %v1157 = vcombine.high %v1131, %v1139
          %v1159 = vunpack.c.l.s4 1934713408
          %v1160 = vunpack.c.0.s8 %v1159
          %v1161 = vlaneseq
          %v1162 = vshrl.u32 %v1161, 7
          %v1163 = vsub.s32 %v1160, %v1162
          %v1164 = vrot.slane %v1156, %v1163
          %v1166 = vunpack.c.l.s4 1934713408
          %v1167 = vunpack.c.0.s8 %v1166
          %v1168 = vlaneseq
          %v1169 = vshrl.u32 %v1168, 7
          %v1170 = vsub.s32 %v1167, %v1169
          %v1171 = vrot.slane %v1157, %v1170
          %v1172 = vcombine.low %v1148, %v1164
          %v1173 = vcombine.high %v1148, %v1164
          %v1174 = vcombine.low %v1155, %v1171
          %v1175 = vcombine.high %v1155, %v1171
          %v1176 = vpack.c.bf16 %v1172, %v1172
          %v1177 = vpack.c.bf16 %v1173, %v1173
          %v1178 = vpack.c.bf16 %v1174, %v1174
          %v1179 = vpack.c.bf16 %v1175, %v1175
          %1180 = vst.msk [vmem:[#allocation3] sm:$0xf] %vm1025, %v1176
          %1181 = vst.msk [vmem:[#allocation3 + $0x4] sm:$0xf] %vm1025, %v1177
          %1182 = vst.msk [vmem:[#allocation3 + $0x8] sm:$0xf] %vm1025, %v1178
          %1183 = vst.msk [vmem:[#allocation3 + $0xc] sm:$0xf] %vm1025, %v1179
        $region120: #{tpu_custom_call.1} parent=67 // pred_fallthru
          _
        %s1184 = smul.u32 %s42, 8
        %s1185 = scalar_lea.vmem %s517, %s1184 [#allocation4]
        %v1186 = vld [vmem:[%s1185] sm:$0xff]
        %v1187 = vld [vmem:[%s525] sm:$0x1]
        %v1188 = vpack.c.bf16 %v1186, %v1186
        %v1189 = vld [vmem:[#allocation9] sm:$0xf]
        %v1190 = vld [vmem:[#allocation9 + $0x4] sm:$0xf]
        %v1191 = vld [vmem:[#allocation9 + $0x8] sm:$0xf]
        %v1192 = vld [vmem:[#allocation9 + $0xc] sm:$0xf]
        %v1193 = vld [vmem:[#allocation10] sm:$0x1]
        %v1195 = vlaneseq
        %v1196 = vshrl.u32 %v1195, 7
        %v1197 = vsub.s32 0, %v1196
        %v1198 = vrot.slane %v1193, %v1197
        %v1204 = vunpack.c.l.b16 %v1189
        %v1205 = vunpack.c.l.b16 %v1190
        %v1206 = vunpack.c.l.b16 %v1191
        %v1207 = vunpack.c.l.b16 %v1192
        %v1208 = vpack.c.b16 %v1205, %v1204
        %v1209 = vpack.c.b16 %v1207, %v1206
        %vm1212 = vcmask 261120
        %v1214 = vsel %vm1212, %v1188, 0
        %1216 = vmatprep.subr.bf16.mxu0 0
        %1217 = vmatpush1.bf16.msra.mxu0 %v1208
        %1218 = vmatprep.subr.bf16.mxu0 0
        %1219 = vmatpush1.bf16.msra.mxu0 %v1209
        %1220 = vmatprep.subr.bf16.mxu0 0
        %1221 = vmatpush1.bf16.msra.mxu0 0
        %1222 = vmatprep.subr.bf16.mxu0 0
        %1223 = vmatpush1.bf16.msra.mxu0 0
        %1224 = vmatprep.subr.bf16.mxu0 0
        %1225 = vmatpush1.bf16.msra.mxu0 0
        %1226 = vmatprep.subr.bf16.mxu0 0
        %1227 = vmatpush1.bf16.msra.mxu0 0
        %1228 = vmatprep.subr.bf16.mxu0 0
        %1229 = vmatpush1.bf16.msra.mxu0 0
        %1230 = vmatprep.subr.bf16.mxu0 0
        %1231 = vmatpush1.bf16.msra.mxu0 0
        %1232 = vmatprep.subr.bf16.mxu0 0
        %1233 = vmatpush1.bf16.msra.mxu0 0
        %1234 = vmatprep.subr.bf16.mxu0 0
        %1235 = vmatpush1.bf16.msra.mxu0 0
        %1236 = vmatprep.subr.bf16.mxu0 0
        %1237 = vmatpush1.bf16.msra.mxu0 0
        %1238 = vmatprep.subr.bf16.mxu0 0
        %1239 = vmatpush1.bf16.msra.mxu0 0
        %1240 = vmatprep.subr.bf16.mxu0 0
        %1241 = vmatpush1.bf16.msra.mxu0 0
        %1242 = vmatprep.subr.bf16.mxu0 0
        %1243 = vmatpush1.bf16.msra.mxu0 0
        %1244 = vmatprep.subr.bf16.mxu0 0
        %1245 = vmatpush1.bf16.msra.mxu0 0
        %1246 = vmatprep.subr.bf16.mxu0 0
        %1247 = vmatpush1.bf16.msra.mxu0 0
        %1248 = vmatprep.mubr.bf16.mxu0 0
        %1249 = vmatmul.mubr.bf16.gmra.mrb[0].mxu0 %v1214
        %v1250 = vpop.f32.mrb[0].mxu0
        %v1251 = vadd.f32 %v1198, %v1250
        %v1252 = vpop.f32.mrb[0].mxu0
        %v1253 = vpop.f32.mrb[0].mxu0
        %v1254 = vpop.f32.mrb[0].mxu0
        %1255 = vdwg.mxu0
        %1257 = vrot.lane.b32.xlu0 %v1251, 120
        %v1258 = vpop.permute.xlu0 %1257
        %1260 = vrot.lane.b32.xlu0 %v1251, 112
        %v1261 = vpop.permute.xlu0 %1260
        %1263 = vrot.lane.b32.xlu0 %v1251, 104
        %v1264 = vpop.permute.xlu0 %1263
        %v1266 = vcombine.low %v1251, %v1261
        %v1267 = vcombine.high %v1251, %v1261
        %v1269 = vunpack.c.l.s4 1983009808
        %v1270 = vunpack.c.0.s8 %v1269
        %v1271 = vlaneseq
        %v1272 = vshrl.u32 %v1271, 7
        %v1273 = vsub.s32 %v1270, %v1272
        %v1274 = vrot.slane %v1266, %v1273
        %v1276 = vunpack.c.l.s4 1983009808
        %v1277 = vunpack.c.0.s8 %v1276
        %v1278 = vlaneseq
        %v1279 = vshrl.u32 %v1278, 7
        %v1280 = vsub.s32 %v1277, %v1279
        %v1281 = vrot.slane %v1267, %v1280
        %v1282 = vcombine.low %v1258, %v1264
        %v1283 = vcombine.high %v1258, %v1264
        %v1285 = vunpack.c.l.s4 1983009808
        %v1286 = vunpack.c.0.s8 %v1285
        %v1287 = vlaneseq
        %v1288 = vshrl.u32 %v1287, 7
        %v1289 = vsub.s32 %v1286, %v1288
        %v1290 = vrot.slane %v1282, %v1289
        %v1292 = vunpack.c.l.s4 1983009808
        %v1293 = vunpack.c.0.s8 %v1292
        %v1294 = vlaneseq
        %v1295 = vshrl.u32 %v1294, 7
        %v1296 = vsub.s32 %v1293, %v1295
        %v1297 = vrot.slane %v1283, %v1296
        %v1298 = vcombine.low %v1274, %v1290
        %v1299 = vcombine.high %v1274, %v1290
        %v1301 = vunpack.c.l.s4 1934713408
        %v1302 = vunpack.c.0.s8 %v1301
        %v1303 = vlaneseq
        %v1304 = vshrl.u32 %v1303, 7
        %v1305 = vsub.s32 %v1302, %v1304
        %v1306 = vrot.slane %v1298, %v1305
        %v1308 = vunpack.c.l.s4 1934713408
        %v1309 = vunpack.c.0.s8 %v1308
        %v1310 = vlaneseq
        %v1311 = vshrl.u32 %v1310, 7
        %v1312 = vsub.s32 %v1309, %v1311
        %v1313 = vrot.slane %v1299, %v1312
        %v1314 = vcombine.low %v1281, %v1297
        %v1315 = vcombine.high %v1281, %v1297
        %v1317 = vunpack.c.l.s4 1934713408
        %v1318 = vunpack.c.0.s8 %v1317
        %v1319 = vlaneseq
        %v1320 = vshrl.u32 %v1319, 7
        %v1321 = vsub.s32 %v1318, %v1320
        %v1322 = vrot.slane %v1314, %v1321
        %v1324 = vunpack.c.l.s4 1934713408
        %v1325 = vunpack.c.0.s8 %v1324
        %v1326 = vlaneseq
        %v1327 = vshrl.u32 %v1326, 7
        %v1328 = vsub.s32 %v1325, %v1327
        %v1329 = vrot.slane %v1315, %v1328
        %v1330 = vcombine.high %v1306, 0.0
        %v1331 = vcombine.high %v1313, 0.0
        %v1332 = vcombine.high %v1322, 0.0
        %v1333 = vcombine.high %v1329, 0.0
        %v1334 = vcombine.low %v1306, %v1313
        %v1336 = vunpack.c.l.s4 1983009808
        %v1337 = vunpack.c.0.s8 %v1336
        %v1338 = vlaneseq
        %v1339 = vshrl.u32 %v1338, 7
        %v1340 = vsub.s32 %v1337, %v1339
        %v1341 = vrot.slane %v1334, %v1340
        %v1342 = vcombine.low %v1330, %v1331
        %v1344 = vunpack.c.l.s4 1983009808
        %v1345 = vunpack.c.0.s8 %v1344
        %v1346 = vlaneseq
        %v1347 = vshrl.u32 %v1346, 7
        %v1348 = vsub.s32 %v1345, %v1347
        %v1349 = vrot.slane %v1342, %v1348
        %v1350 = vcombine.low %v1322, %v1329
        %v1352 = vunpack.c.l.s4 1983009808
        %v1353 = vunpack.c.0.s8 %v1352
        %v1354 = vlaneseq
        %v1355 = vshrl.u32 %v1354, 7
        %v1356 = vsub.s32 %v1353, %v1355
        %v1357 = vrot.slane %v1350, %v1356
        %v1358 = vcombine.low %v1332, %v1333
        %v1360 = vunpack.c.l.s4 1983009808
        %v1361 = vunpack.c.0.s8 %v1360
        %v1362 = vlaneseq
        %v1363 = vshrl.u32 %v1362, 7
        %v1364 = vsub.s32 %v1361, %v1363
        %v1365 = vrot.slane %v1358, %v1364
        %v1366 = vcombine.low %v1341, %v1349
        %v1367 = vcombine.high %v1341, %v1349
        %v1369 = vunpack.c.l.s4 1934713408
        %v1370 = vunpack.c.0.s8 %v1369
        %v1371 = vlaneseq
        %v1372 = vshrl.u32 %v1371, 7
        %v1373 = vsub.s32 %v1370, %v1372
        %v1374 = vrot.slane %v1366, %v1373
        %v1376 = vunpack.c.l.s4 1934713408
        %v1377 = vunpack.c.0.s8 %v1376
        %v1378 = vlaneseq
        %v1379 = vshrl.u32 %v1378, 7
        %v1380 = vsub.s32 %v1377, %v1379
        %v1381 = vrot.slane %v1367, %v1380
        %v1382 = vcombine.low %v1357, %v1365
        %v1383 = vcombine.high %v1357, %v1365
        %v1385 = vunpack.c.l.s4 1934713408
        %v1386 = vunpack.c.0.s8 %v1385
        %v1387 = vlaneseq
        %v1388 = vshrl.u32 %v1387, 7
        %v1389 = vsub.s32 %v1386, %v1388
        %v1390 = vrot.slane %v1382, %v1389
        %v1392 = vunpack.c.l.s4 1934713408
        %v1393 = vunpack.c.0.s8 %v1392
        %v1394 = vlaneseq
        %v1395 = vshrl.u32 %v1394, 7
        %v1396 = vsub.s32 %v1393, %v1395
        %v1397 = vrot.slane %v1383, %v1396
        %v1398 = vcombine.low %v1374, %v1390
        %v1399 = vcombine.high %v1374, %v1390
        %v1400 = vcombine.low %v1381, %v1397
        %v1401 = vcombine.high %v1381, %v1397
        %v1402 = vpack.c.bf16 %v1398, %v1398
        %v1403 = vpack.c.bf16 %v1399, %v1399
        %v1404 = vpack.c.bf16 %v1400, %v1400
        %v1405 = vpack.c.bf16 %v1401, %v1401
        %v1406 = vld [vmem:[#allocation2] sm:$0xf]
        %v1407 = vld [vmem:[#allocation2 + $0x4] sm:$0xf]
        %v1408 = vld [vmem:[#allocation2 + $0x8] sm:$0xf]
        %v1409 = vld [vmem:[#allocation2 + $0xc] sm:$0xf]
        %v1411 = vlaneseq
        %v1412 = vshrl.u32 %v1411, 7
        %v1413 = vsub.s32 0, %v1412
        %v1414 = vrot.slane %v1187, %v1413
        %vm1416 = vcmask 64512
        %v1418 = vsel %vm1416, %v1402, 0
        %vm1420 = vcmask 1043456
        %v1422 = vsel %vm1420, %v1406, 0
        %1424 = vmatprep.subr.bf16.mxu0 0
        %1425 = vmatpush1.bf16.msra.mxu0 %v1422
        %1426 = vmatprep.subr.bf16.mxu0 0
        %1427 = vmatpush1.bf16.msra.mxu0 0
        %1428 = vmatprep.subr.bf16.mxu0 0
        %1429 = vmatpush1.bf16.msra.mxu0 0
        %1430 = vmatprep.subr.bf16.mxu0 0
        %1431 = vmatpush1.bf16.msra.mxu0 0
        %1432 = vmatprep.subr.bf16.mxu0 0
        %1433 = vmatpush1.bf16.msra.mxu0 0
        %1434 = vmatprep.subr.bf16.mxu0 0
        %1435 = vmatpush1.bf16.msra.mxu0 0
        %1436 = vmatprep.subr.bf16.mxu0 0
        %1437 = vmatpush1.bf16.msra.mxu0 0
        %1438 = vmatprep.subr.bf16.mxu0 0
        %1439 = vmatpush1.bf16.msra.mxu0 0
        %1440 = vmatprep.subr.bf16.mxu0 0
        %1441 = vmatpush1.bf16.msra.mxu0 0
        %1442 = vmatprep.subr.bf16.mxu0 0
        %1443 = vmatpush1.bf16.msra.mxu0 0
        %1444 = vmatprep.subr.bf16.mxu0 0
        %1445 = vmatpush1.bf16.msra.mxu0 0
        %1446 = vmatprep.subr.bf16.mxu0 0
        %1447 = vmatpush1.bf16.msra.mxu0 0
        %1448 = vmatprep.subr.bf16.mxu0 0
        %1449 = vmatpush1.bf16.msra.mxu0 0
        %1450 = vmatprep.subr.bf16.mxu0 0
        %1451 = vmatpush1.bf16.msra.mxu0 0
        %1452 = vmatprep.subr.bf16.mxu0 0
        %1453 = vmatpush1.bf16.msra.mxu0 0
        %1454 = vmatprep.subr.bf16.mxu0 0
        %1455 = vmatpush1.bf16.msra.mxu0 0
        %1456 = vmatprep.mubr.bf16.mxu0 0
        %1457 = vmatmul.mubr.bf16.gmra.mrb[0].mxu0 %v1418
        %v1458 = vpop.f32.mrb[0].mxu0
        %v1459 = vadd.f32 %v1414, %v1458
        %v1460 = vpop.f32.mrb[0].mxu0
        %v1461 = vpop.f32.mrb[0].mxu0
        %v1462 = vpop.f32.mrb[0].mxu0
        %1463 = vdwg.mxu0
        %v1465 = vsel %vm1416, %v1403, 0
        %v1468 = vsel %vm1420, %v1407, 0
        %1470 = vmatprep.subr.bf16.mxu0 0
        %1471 = vmatpush1.bf16.msra.mxu0 %v1468
        %1472 = vmatprep.subr.bf16.mxu0 0
        %1473 = vmatpush1.bf16.msra.mxu0 0
        %1474 = vmatprep.subr.bf16.mxu0 0
        %1475 = vmatpush1.bf16.msra.mxu0 0
        %1476 = vmatprep.subr.bf16.mxu0 0
        %1477 = vmatpush1.bf16.msra.mxu0 0
        %1478 = vmatprep.subr.bf16.mxu0 0
        %1479 = vmatpush1.bf16.msra.mxu0 0
        %1480 = vmatprep.subr.bf16.mxu0 0
        %1481 = vmatpush1.bf16.msra.mxu0 0
        %1482 = vmatprep.subr.bf16.mxu0 0
        %1483 = vmatpush1.bf16.msra.mxu0 0
        %1484 = vmatprep.subr.bf16.mxu0 0
        %1485 = vmatpush1.bf16.msra.mxu0 0
        %1486 = vmatprep.subr.bf16.mxu0 0
        %1487 = vmatpush1.bf16.msra.mxu0 0
        %1488 = vmatprep.subr.bf16.mxu0 0
        %1489 = vmatpush1.bf16.msra.mxu0 0
        %1490 = vmatprep.subr.bf16.mxu0 0
        %1491 = vmatpush1.bf16.msra.mxu0 0
        %1492 = vmatprep.subr.bf16.mxu0 0
        %1493 = vmatpush1.bf16.msra.mxu0 0
        %1494 = vmatprep.subr.bf16.mxu0 0
        %1495 = vmatpush1.bf16.msra.mxu0 0
        %1496 = vmatprep.subr.bf16.mxu0 0
        %1497 = vmatpush1.bf16.msra.mxu0 0
        %1498 = vmatprep.subr.bf16.mxu0 0
        %1499 = vmatpush1.bf16.msra.mxu0 0
        %1500 = vmatprep.subr.bf16.mxu0 0
        %1501 = vmatpush1.bf16.msra.mxu0 0
        %1502 = vmatprep.mubr.bf16.mxu0 0
        %1503 = vmatmul.mubr.bf16.gmra.mrb[0].mxu0 %v1465
        %v1504 = vpop.f32.mrb[0].mxu0
        %v1505 = vadd.f32 %v1414, %v1504
        %v1506 = vpop.f32.mrb[0].mxu0
        %v1507 = vpop.f32.mrb[0].mxu0
        %v1508 = vpop.f32.mrb[0].mxu0
        %1509 = vdwg.mxu0
        %v1511 = vsel %vm1416, %v1404, 0
        %v1514 = vsel %vm1420, %v1408, 0
        %1516 = vmatprep.subr.bf16.mxu0 0
        %1517 = vmatpush1.bf16.msra.mxu0 %v1514
        %1518 = vmatprep.subr.bf16.mxu0 0
        %1519 = vmatpush1.bf16.msra.mxu0 0
        %1520 = vmatprep.subr.bf16.mxu0 0
        %1521 = vmatpush1.bf16.msra.mxu0 0
        %1522 = vmatprep.subr.bf16.mxu0 0
        %1523 = vmatpush1.bf16.msra.mxu0 0
        %1524 = vmatprep.subr.bf16.mxu0 0
        %1525 = vmatpush1.bf16.msra.mxu0 0
        %1526 = vmatprep.subr.bf16.mxu0 0
        %1527 = vmatpush1.bf16.msra.mxu0 0
        %1528 = vmatprep.subr.bf16.mxu0 0
        %1529 = vmatpush1.bf16.msra.mxu0 0
        %1530 = vmatprep.subr.bf16.mxu0 0
        %1531 = vmatpush1.bf16.msra.mxu0 0
        %1532 = vmatprep.subr.bf16.mxu0 0
        %1533 = vmatpush1.bf16.msra.mxu0 0
        %1534 = vmatprep.subr.bf16.mxu0 0
        %1535 = vmatpush1.bf16.msra.mxu0 0
        %1536 = vmatprep.subr.bf16.mxu0 0
        %1537 = vmatpush1.bf16.msra.mxu0 0
        %1538 = vmatprep.subr.bf16.mxu0 0
        %1539 = vmatpush1.bf16.msra.mxu0 0
        %1540 = vmatprep.subr.bf16.mxu0 0
        %1541 = vmatpush1.bf16.msra.mxu0 0
        %1542 = vmatprep.subr.bf16.mxu0 0
        %1543 = vmatpush1.bf16.msra.mxu0 0
        %1544 = vmatprep.subr.bf16.mxu0 0
        %1545 = vmatpush1.bf16.msra.mxu0 0
        %1546 = vmatprep.subr.bf16.mxu0 0
        %1547 = vmatpush1.bf16.msra.mxu0 0
        %1548 = vmatprep.mubr.bf16.mxu0 0
        %1549 = vmatmul.mubr.bf16.gmra.mrb[0].mxu0 %v1511
        %v1550 = vpop.f32.mrb[0].mxu0
        %v1551 = vadd.f32 %v1414, %v1550
        %v1552 = vpop.f32.mrb[0].mxu0
        %v1553 = vpop.f32.mrb[0].mxu0
        %v1554 = vpop.f32.mrb[0].mxu0
        %1555 = vdwg.mxu0
        %v1557 = vsel %vm1416, %v1405, 0
        %v1560 = vsel %vm1420, %v1409, 0
        %1562 = vmatprep.subr.bf16.mxu0 0
        %1563 = vmatpush1.bf16.msra.mxu0 %v1560
        %1564 = vmatprep.subr.bf16.mxu0 0
        %1565 = vmatpush1.bf16.msra.mxu0 0
        %1566 = vmatprep.subr.bf16.mxu0 0
        %1567 = vmatpush1.bf16.msra.mxu0 0
        %1568 = vmatprep.subr.bf16.mxu0 0
        %1569 = vmatpush1.bf16.msra.mxu0 0
        %1570 = vmatprep.subr.bf16.mxu0 0
        %1571 = vmatpush1.bf16.msra.mxu0 0
        %1572 = vmatprep.subr.bf16.mxu0 0
        %1573 = vmatpush1.bf16.msra.mxu0 0
        %1574 = vmatprep.subr.bf16.mxu0 0
        %1575 = vmatpush1.bf16.msra.mxu0 0
        %1576 = vmatprep.subr.bf16.mxu0 0
        %1577 = vmatpush1.bf16.msra.mxu0 0
        %1578 = vmatprep.subr.bf16.mxu0 0
        %1579 = vmatpush1.bf16.msra.mxu0 0
        %1580 = vmatprep.subr.bf16.mxu0 0
        %1581 = vmatpush1.bf16.msra.mxu0 0
        %1582 = vmatprep.subr.bf16.mxu0 0
        %1583 = vmatpush1.bf16.msra.mxu0 0
        %1584 = vmatprep.subr.bf16.mxu0 0
        %1585 = vmatpush1.bf16.msra.mxu0 0
        %1586 = vmatprep.subr.bf16.mxu0 0
        %1587 = vmatpush1.bf16.msra.mxu0 0
        %1588 = vmatprep.subr.bf16.mxu0 0
        %1589 = vmatpush1.bf16.msra.mxu0 0
        %1590 = vmatprep.subr.bf16.mxu0 0
        %1591 = vmatpush1.bf16.msra.mxu0 0
        %1592 = vmatprep.subr.bf16.mxu0 0
        %1593 = vmatpush1.bf16.msra.mxu0 0
        %1594 = vmatprep.mubr.bf16.mxu0 0
        %1595 = vmatmul.mubr.bf16.gmra.mrb[0].mxu0 %v1557
        %v1596 = vpop.f32.mrb[0].mxu0
        %v1597 = vadd.f32 %v1414, %v1596
        %v1598 = vpop.f32.mrb[0].mxu0
        %v1599 = vpop.f32.mrb[0].mxu0
        %v1600 = vpop.f32.mrb[0].mxu0
        %1601 = vdwg.mxu0
        %v1602 = vsel %vm1416, %v1459, -inf
        %1603 = vmax.xlane.f32.xlu0 %v1602
        %v1604 = vpop.xlane.xlu0 %1603
        %v1605 = vsel %vm1416, %v1505, -inf
        %1606 = vmax.xlane.f32.xlu0 %v1605
        %v1607 = vpop.xlane.xlu0 %1606
        %v1608 = vsel %vm1416, %v1551, -inf
        %1609 = vmax.xlane.f32.xlu0 %v1608
        %v1610 = vpop.xlane.xlu0 %1609
        %v1611 = vsel %vm1416, %v1597, -inf
        %1612 = vmax.xlane.f32.xlu0 %v1611
        %v1613 = vpop.xlane.xlu0 %1612
        %v1614 = vsub.f32 %v1459, %v1604
        %v1615 = vsub.f32 %v1505, %v1607
        %v1616 = vsub.f32 %v1551, %v1610
        %v1617 = vsub.f32 %v1597, %v1613
        %v1618 = vmul.f32 %v1614, 1.442695
        %v1619 = vpow.pop %v1618
        %v1620 = vmul.f32 %v1615, 1.442695
        %v1621 = vpow.pop %v1620
        %v1622 = vmul.f32 %v1616, 1.442695
        %v1623 = vpow.pop %v1622
        %v1624 = vmul.f32 %v1617, 1.442695
        %v1625 = vpow.pop %v1624
        %v1626 = vsel %vm1416, %v1619, 0.0
        %1627 = vadd.xlane.f32.xlu0 %v1626
        %v1628 = vpop.xlane.xlu0 %1627
        %v1629 = vsel %vm1416, %v1621, 0.0
        %1630 = vadd.xlane.f32.xlu0 %v1629
        %v1631 = vpop.xlane.xlu0 %1630
        %v1632 = vsel %vm1416, %v1623, 0.0
        %1633 = vadd.xlane.f32.xlu0 %v1632
        %v1634 = vpop.xlane.xlu0 %1633
        %v1635 = vsel %vm1416, %v1625, 0.0
        %1636 = vadd.xlane.f32.xlu0 %v1635
        %v1637 = vpop.xlane.xlu0 %1636
        %v1638 = vrcp.pop %v1628
        %v1639 = vrcp.pop %v1631
        %v1640 = vrcp.pop %v1634
        %v1641 = vrcp.pop %v1637
        %v1642 = vmul.f32 %v1619, %v1638
        %v1643 = vmul.f32 %v1621, %v1639
        %v1644 = vmul.f32 %v1623, %v1640
        %v1645 = vmul.f32 %v1625, %v1641
        %v1646 = vpack.c.bf16 %v1642, %v1642
        %v1647 = vpack.c.bf16 %v1643, %v1643
        %v1648 = vpack.c.bf16 %v1644, %v1644
        %v1649 = vpack.c.bf16 %v1645, %v1645
        %v1650 = vld [vmem:[#allocation3] sm:$0xf]
        %v1651 = vld [vmem:[#allocation3 + $0x4] sm:$0xf]
        %v1652 = vld [vmem:[#allocation3 + $0x8] sm:$0xf]
        %v1653 = vld [vmem:[#allocation3 + $0xc] sm:$0xf]
        %v1655 = vsel %vm1416, %v1646, 0
        %v1658 = vsel %vm1420, %v1650, 0
        %1660 = vmatprep.subr.bf16.mxu0 0
        %1661 = vmatpush1.bf16.msra.mxu0 %v1658
        %1662 = vmatprep.subr.bf16.mxu0 0
        %1663 = vmatpush1.bf16.msra.mxu0 0
        %1664 = vmatprep.subr.bf16.mxu0 0
        %1665 = vmatpush1.bf16.msra.mxu0 0
        %1666 = vmatprep.subr.bf16.mxu0 0
        %1667 = vmatpush1.bf16.msra.mxu0 0
        %1668 = vmatprep.subr.bf16.mxu0 0
        %1669 = vmatpush1.bf16.msra.mxu0 0
        %1670 = vmatprep.subr.bf16.mxu0 0
        %1671 = vmatpush1.bf16.msra.mxu0 0
        %1672 = vmatprep.subr.bf16.mxu0 0
        %1673 = vmatpush1.bf16.msra.mxu0 0
        %1674 = vmatprep.subr.bf16.mxu0 0
        %1675 = vmatpush1.bf16.msra.mxu0 0
        %1676 = vmatprep.subr.bf16.mxu0 0
        %1677 = vmatpush1.bf16.msra.mxu0 0
        %1678 = vmatprep.subr.bf16.mxu0 0
        %1679 = vmatpush1.bf16.msra.mxu0 0
        %1680 = vmatprep.subr.bf16.mxu0 0
        %1681 = vmatpush1.bf16.msra.mxu0 0
        %1682 = vmatprep.subr.bf16.mxu0 0
        %1683 = vmatpush1.bf16.msra.mxu0 0
        %1684 = vmatprep.subr.bf16.mxu0 0
        %1685 = vmatpush1.bf16.msra.mxu0 0
        %1686 = vmatprep.subr.bf16.mxu0 0
        %1687 = vmatpush1.bf16.msra.mxu0 0
        %1688 = vmatprep.subr.bf16.mxu0 0
        %1689 = vmatpush1.bf16.msra.mxu0 0
        %1690 = vmatprep.subr.bf16.mxu0 0
        %1691 = vmatpush1.bf16.msra.mxu0 0
        %1692 = vmatprep.mubr.bf16.mxu0 0
        %1693 = vmatmul.mubr.bf16.gmra.mrb[0].mxu0 %v1655
        %v1694 = vpop.f32.mrb[0].mxu0
        %v1695 = vadd.f32 0.0, %v1694
        %v1696 = vpop.f32.mrb[0].mxu0
        %v1697 = vpop.f32.mrb[0].mxu0
        %v1698 = vpop.f32.mrb[0].mxu0
        %1699 = vdwg.mxu0
        %v1701 = vsel %vm1416, %v1647, 0
        %v1704 = vsel %vm1420, %v1651, 0
        %1706 = vmatprep.subr.bf16.mxu0 0
        %1707 = vmatpush1.bf16.msra.mxu0 %v1704
        %1708 = vmatprep.subr.bf16.mxu0 0
        %1709 = vmatpush1.bf16.msra.mxu0 0
        %1710 = vmatprep.subr.bf16.mxu0 0
        %1711 = vmatpush1.bf16.msra.mxu0 0
        %1712 = vmatprep.subr.bf16.mxu0 0
        %1713 = vmatpush1.bf16.msra.mxu0 0
        %1714 = vmatprep.subr.bf16.mxu0 0
        %1715 = vmatpush1.bf16.msra.mxu0 0
        %1716 = vmatprep.subr.bf16.mxu0 0
        %1717 = vmatpush1.bf16.msra.mxu0 0
        %1718 = vmatprep.subr.bf16.mxu0 0
        %1719 = vmatpush1.bf16.msra.mxu0 0
        %1720 = vmatprep.subr.bf16.mxu0 0
        %1721 = vmatpush1.bf16.msra.mxu0 0
        %1722 = vmatprep.subr.bf16.mxu0 0
        %1723 = vmatpush1.bf16.msra.mxu0 0
        %1724 = vmatprep.subr.bf16.mxu0 0
        %1725 = vmatpush1.bf16.msra.mxu0 0
        %1726 = vmatprep.subr.bf16.mxu0 0
        %1727 = vmatpush1.bf16.msra.mxu0 0
        %1728 = vmatprep.subr.bf16.mxu0 0
        %1729 = vmatpush1.bf16.msra.mxu0 0
        %1730 = vmatprep.subr.bf16.mxu0 0
        %1731 = vmatpush1.bf16.msra.mxu0 0
        %1732 = vmatprep.subr.bf16.mxu0 0
        %1733 = vmatpush1.bf16.msra.mxu0 0
        %1734 = vmatprep.subr.bf16.mxu0 0
        %1735 = vmatpush1.bf16.msra.mxu0 0
        %1736 = vmatprep.subr.bf16.mxu0 0
        %1737 = vmatpush1.bf16.msra.mxu0 0
        %1738 = vmatprep.mubr.bf16.mxu0 0
        %1739 = vmatmul.mubr.bf16.gmra.mrb[0].mxu0 %v1701
        %v1740 = vpop.f32.mrb[0].mxu0
        %v1741 = vadd.f32 0.0, %v1740
        %v1742 = vpop.f32.mrb[0].mxu0
        %v1743 = vpop.f32.mrb[0].mxu0
        %v1744 = vpop.f32.mrb[0].mxu0
        %1745 = vdwg.mxu0
        %v1747 = vsel %vm1416, %v1648, 0
        %v1750 = vsel %vm1420, %v1652, 0
        %1752 = vmatprep.subr.bf16.mxu0 0
        %1753 = vmatpush1.bf16.msra.mxu0 %v1750
        %1754 = vmatprep.subr.bf16.mxu0 0
        %1755 = vmatpush1.bf16.msra.mxu0 0
        %1756 = vmatprep.subr.bf16.mxu0 0
        %1757 = vmatpush1.bf16.msra.mxu0 0
        %1758 = vmatprep.subr.bf16.mxu0 0
        %1759 = vmatpush1.bf16.msra.mxu0 0
        %1760 = vmatprep.subr.bf16.mxu0 0
        %1761 = vmatpush1.bf16.msra.mxu0 0
        %1762 = vmatprep.subr.bf16.mxu0 0
        %1763 = vmatpush1.bf16.msra.mxu0 0
        %1764 = vmatprep.subr.bf16.mxu0 0
        %1765 = vmatpush1.bf16.msra.mxu0 0
        %1766 = vmatprep.subr.bf16.mxu0 0
        %1767 = vmatpush1.bf16.msra.mxu0 0
        %1768 = vmatprep.subr.bf16.mxu0 0
        %1769 = vmatpush1.bf16.msra.mxu0 0
        %1770 = vmatprep.subr.bf16.mxu0 0
        %1771 = vmatpush1.bf16.msra.mxu0 0
        %1772 = vmatprep.subr.bf16.mxu0 0
        %1773 = vmatpush1.bf16.msra.mxu0 0
        %1774 = vmatprep.subr.bf16.mxu0 0
        %1775 = vmatpush1.bf16.msra.mxu0 0
        %1776 = vmatprep.subr.bf16.mxu0 0
        %1777 = vmatpush1.bf16.msra.mxu0 0
        %1778 = vmatprep.subr.bf16.mxu0 0
        %1779 = vmatpush1.bf16.msra.mxu0 0
        %1780 = vmatprep.subr.bf16.mxu0 0
        %1781 = vmatpush1.bf16.msra.mxu0 0
        %1782 = vmatprep.subr.bf16.mxu0 0
        %1783 = vmatpush1.bf16.msra.mxu0 0
        %1784 = vmatprep.mubr.bf16.mxu0 0
        %1785 = vmatmul.mubr.bf16.gmra.mrb[0].mxu0 %v1747
        %v1786 = vpop.f32.mrb[0].mxu0
        %v1787 = vadd.f32 0.0, %v1786
        %v1788 = vpop.f32.mrb[0].mxu0
        %v1789 = vpop.f32.mrb[0].mxu0
        %v1790 = vpop.f32.mrb[0].mxu0
        %1791 = vdwg.mxu0
        %v1793 = vsel %vm1416, %v1649, 0
        %v1796 = vsel %vm1420, %v1653, 0
        %1798 = vmatprep.subr.bf16.mxu0 0
        %1799 = vmatpush1.bf16.msra.mxu0 %v1796
        %1800 = vmatprep.subr.bf16.mxu0 0
        %1801 = vmatpush1.bf16.msra.mxu0 0
        %1802 = vmatprep.subr.bf16.mxu0 0
        %1803 = vmatpush1.bf16.msra.mxu0 0
        %1804 = vmatprep.subr.bf16.mxu0 0
        %1805 = vmatpush1.bf16.msra.mxu0 0
        %1806 = vmatprep.subr.bf16.mxu0 0
        %1807 = vmatpush1.bf16.msra.mxu0 0
        %1808 = vmatprep.subr.bf16.mxu0 0
        %1809 = vmatpush1.bf16.msra.mxu0 0
        %1810 = vmatprep.subr.bf16.mxu0 0
        %1811 = vmatpush1.bf16.msra.mxu0 0
        %1812 = vmatprep.subr.bf16.mxu0 0
        %1813 = vmatpush1.bf16.msra.mxu0 0
        %1814 = vmatprep.subr.bf16.mxu0 0
        %1815 = vmatpush1.bf16.msra.mxu0 0
        %1816 = vmatprep.subr.bf16.mxu0 0
        %1817 = vmatpush1.bf16.msra.mxu0 0
        %1818 = vmatprep.subr.bf16.mxu0 0
        %1819 = vmatpush1.bf16.msra.mxu0 0
        %1820 = vmatprep.subr.bf16.mxu0 0
        %1821 = vmatpush1.bf16.msra.mxu0 0
        %1822 = vmatprep.subr.bf16.mxu0 0
        %1823 = vmatpush1.bf16.msra.mxu0 0
        %1824 = vmatprep.subr.bf16.mxu0 0
        %1825 = vmatpush1.bf16.msra.mxu0 0
        %1826 = vmatprep.subr.bf16.mxu0 0
        %1827 = vmatpush1.bf16.msra.mxu0 0
        %1828 = vmatprep.subr.bf16.mxu0 0
        %1829 = vmatpush1.bf16.msra.mxu0 0
        %1830 = vmatprep.mubr.bf16.mxu0 0
        %1831 = vmatmul.mubr.bf16.gmra.mrb[0].mxu0 %v1793
        %v1832 = vpop.f32.mrb[0].mxu0
        %v1833 = vadd.f32 0.0, %v1832
        %v1834 = vpop.f32.mrb[0].mxu0
        %v1835 = vpop.f32.mrb[0].mxu0
        %v1836 = vpop.f32.mrb[0].mxu0
        %1837 = vdwg.mxu0
        %v1838 = vcombine.low %v1695, %v1787
        %v1839 = vcombine.high %v1695, %v1787
        %v1841 = vunpack.c.l.s4 1983009808
        %v1842 = vunpack.c.0.s8 %v1841
        %v1843 = vlaneseq
        %v1844 = vshrl.u32 %v1843, 7
        %v1845 = vsub.s32 %v1842, %v1844
        %v1846 = vrot.slane %v1838, %v1845
        %v1848 = vunpack.c.l.s4 1983009808
        %v1849 = vunpack.c.0.s8 %v1848
        %v1850 = vlaneseq
        %v1851 = vshrl.u32 %v1850, 7
        %v1852 = vsub.s32 %v1849, %v1851
        %v1853 = vrot.slane %v1839, %v1852
        %v1854 = vcombine.low %v1741, %v1833
        %v1855 = vcombine.high %v1741, %v1833
        %v1857 = vunpack.c.l.s4 1983009808
        %v1858 = vunpack.c.0.s8 %v1857
        %v1859 = vlaneseq
        %v1860 = vshrl.u32 %v1859, 7
        %v1861 = vsub.s32 %v1858, %v1860
        %v1862 = vrot.slane %v1854, %v1861
        %v1864 = vunpack.c.l.s4 1983009808
        %v1865 = vunpack.c.0.s8 %v1864
        %v1866 = vlaneseq
        %v1867 = vshrl.u32 %v1866, 7
        %v1868 = vsub.s32 %v1865, %v1867
        %v1869 = vrot.slane %v1855, %v1868
        %v1870 = vcombine.low %v1846, %v1862
        %v1871 = vcombine.high %v1846, %v1862
        %v1873 = vunpack.c.l.s4 1934713408
        %v1874 = vunpack.c.0.s8 %v1873
        %v1875 = vlaneseq
        %v1876 = vshrl.u32 %v1875, 7
        %v1877 = vsub.s32 %v1874, %v1876
        %v1878 = vrot.slane %v1870, %v1877
        %v1880 = vunpack.c.l.s4 1934713408
        %v1881 = vunpack.c.0.s8 %v1880
        %v1882 = vlaneseq
        %v1883 = vshrl.u32 %v1882, 7
        %v1884 = vsub.s32 %v1881, %v1883
        %v1885 = vrot.slane %v1871, %v1884
        %v1886 = vcombine.low %v1853, %v1869
        %v1887 = vcombine.high %v1853, %v1869
        %v1889 = vunpack.c.l.s4 1934713408
        %v1890 = vunpack.c.0.s8 %v1889
        %v1891 = vlaneseq
        %v1892 = vshrl.u32 %v1891, 7
        %v1893 = vsub.s32 %v1890, %v1892
        %v1894 = vrot.slane %v1886, %v1893
        %v1896 = vunpack.c.l.s4 1934713408
        %v1897 = vunpack.c.0.s8 %v1896
        %v1898 = vlaneseq
        %v1899 = vshrl.u32 %v1898, 7
        %v1900 = vsub.s32 %v1897, %v1899
        %v1901 = vrot.slane %v1887, %v1900
        %v1902 = vcombine.high %v1878, 0.0
        %v1903 = vcombine.high %v1885, 0.0
        %v1904 = vcombine.high %v1894, 0.0
        %v1905 = vcombine.high %v1901, 0.0
        %v1906 = vcombine.low %v1878, %v1885
        %v1908 = vunpack.c.l.s4 1983009808
        %v1909 = vunpack.c.0.s8 %v1908
        %v1910 = vlaneseq
        %v1911 = vshrl.u32 %v1910, 7
        %v1912 = vsub.s32 %v1909, %v1911
        %v1913 = vrot.slane %v1906, %v1912
        %v1914 = vcombine.low %v1902, %v1903
        %v1916 = vunpack.c.l.s4 1983009808
        %v1917 = vunpack.c.0.s8 %v1916
        %v1918 = vlaneseq
        %v1919 = vshrl.u32 %v1918, 7
        %v1920 = vsub.s32 %v1917, %v1919
        %v1921 = vrot.slane %v1914, %v1920
        %v1922 = vcombine.low %v1894, %v1901
        %v1924 = vunpack.c.l.s4 1983009808
        %v1925 = vunpack.c.0.s8 %v1924
        %v1926 = vlaneseq
        %v1927 = vshrl.u32 %v1926, 7
        %v1928 = vsub.s32 %v1925, %v1927
        %v1929 = vrot.slane %v1922, %v1928
        %v1930 = vcombine.low %v1904, %v1905
        %v1932 = vunpack.c.l.s4 1983009808
        %v1933 = vunpack.c.0.s8 %v1932
        %v1934 = vlaneseq
        %v1935 = vshrl.u32 %v1934, 7
        %v1936 = vsub.s32 %v1933, %v1935
        %v1937 = vrot.slane %v1930, %v1936
        %v1938 = vcombine.low %v1913, %v1921
        %v1939 = vcombine.high %v1913, %v1921
        %v1941 = vunpack.c.l.s4 1934713408
        %v1942 = vunpack.c.0.s8 %v1941
        %v1943 = vlaneseq
        %v1944 = vshrl.u32 %v1943, 7
        %v1945 = vsub.s32 %v1942, %v1944
        %v1946 = vrot.slane %v1938, %v1945
        %v1948 = vunpack.c.l.s4 1934713408
        %v1949 = vunpack.c.0.s8 %v1948
        %v1950 = vlaneseq
        %v1951 = vshrl.u32 %v1950, 7
        %v1952 = vsub.s32 %v1949, %v1951
        %v1953 = vrot.slane %v1939, %v1952
        %v1954 = vcombine.low %v1929, %v1937
        %v1955 = vcombine.high %v1929, %v1937
        %v1957 = vunpack.c.l.s4 1934713408
        %v1958 = vunpack.c.0.s8 %v1957
        %v1959 = vlaneseq
        %v1960 = vshrl.u32 %v1959, 7
        %v1961 = vsub.s32 %v1958, %v1960
        %v1962 = vrot.slane %v1954, %v1961
        %v1964 = vunpack.c.l.s4 1934713408
        %v1965 = vunpack.c.0.s8 %v1964
        %v1966 = vlaneseq
        %v1967 = vshrl.u32 %v1966, 7
        %v1968 = vsub.s32 %v1965, %v1967
        %v1969 = vrot.slane %v1955, %v1968
        %v1970 = vcombine.low %v1946, %v1962
        %v1971 = vcombine.high %v1946, %v1962
        %v1972 = vcombine.low %v1953, %v1969
        %v1973 = vcombine.high %v1953, %v1969
        %1975 = vrot.lane.b32.xlu0 %v1971, 8
        %v1976 = vpop.permute.xlu0 %1975
        %1979 = vrot.lane.b32.xlu0 %v1972, 16
        %v1980 = vpop.permute.xlu0 %1979
        %1983 = vrot.lane.b32.xlu0 %v1973, 24
        %v1984 = vpop.permute.xlu0 %1983
        %v1986 = vsel %vm1416, %v1970, %v1976
        %vm1987 = vcmask 130048
        %v1988 = vsel %vm1987, %v1986, %v1980
        %vm1989 = vcmask 195584
        %v1990 = vsel %vm1989, %v1988, %v1984
        %v1991 = vpack.c.bf16 %v1990, %v1990
        %v1992 = vld [vmem:[#allocation18] sm:$0xf]
        %v1993 = vld [vmem:[#allocation18 + $0x4] sm:$0xf]
        %v1994 = vld [vmem:[#allocation18 + $0x8] sm:$0xf]
        %v1995 = vld [vmem:[#allocation18 + $0xc] sm:$0xf]
        %v1996 = vld [vmem:[#allocation19] sm:$0x1]
        %v1998 = vlaneseq
        %v1999 = vshrl.u32 %v1998, 7
        %v2000 = vsub.s32 0, %v1999
        %v2001 = vrot.slane %v1996, %v2000
        %v2007 = vunpack.c.l.b16 %v1992
        %v2008 = vunpack.c.l.b16 %v1993
        %v2009 = vunpack.c.l.b16 %v1994
        %v2010 = vunpack.c.l.b16 %v1995
        %v2011 = vpack.c.b16 %v2008, %v2007
        %v2012 = vpack.c.b16 %v2010, %v2009
        %v2016 = vsel %vm1212, %v1991, 0
        %2018 = vmatprep.subr.bf16.mxu0 0
        %2019 = vmatpush1.bf16.msra.mxu0 %v2011
        %2020 = vmatprep.subr.bf16.mxu0 0
        %2021 = vmatpush1.bf16.msra.mxu0 %v2012
        %2022 = vmatprep.subr.bf16.mxu0 0
        %2023 = vmatpush1.bf16.msra.mxu0 0
        %2024 = vmatprep.subr.bf16.mxu0 0
        %2025 = vmatpush1.bf16.msra.mxu0 0
        %2026 = vmatprep.subr.bf16.mxu0 0
        %2027 = vmatpush1.bf16.msra.mxu0 0
        %2028 = vmatprep.subr.bf16.mxu0 0
        %2029 = vmatpush1.bf16.msra.mxu0 0
        %2030 = vmatprep.subr.bf16.mxu0 0
        %2031 = vmatpush1.bf16.msra.mxu0 0
        %2032 = vmatprep.subr.bf16.mxu0 0
        %2033 = vmatpush1.bf16.msra.mxu0 0
        %2034 = vmatprep.subr.bf16.mxu0 0
        %2035 = vmatpush1.bf16.msra.mxu0 0
        %2036 = vmatprep.subr.bf16.mxu0 0
        %2037 = vmatpush1.bf16.msra.mxu0 0
        %2038 = vmatprep.subr.bf16.mxu0 0
        %2039 = vmatpush1.bf16.msra.mxu0 0
        %2040 = vmatprep.subr.bf16.mxu0 0
        %2041 = vmatpush1.bf16.msra.mxu0 0
        %2042 = vmatprep.subr.bf16.mxu0 0
        %2043 = vmatpush1.bf16.msra.mxu0 0
        %2044 = vmatprep.subr.bf16.mxu0 0
        %2045 = vmatpush1.bf16.msra.mxu0 0
        %2046 = vmatprep.subr.bf16.mxu0 0
        %2047 = vmatpush1.bf16.msra.mxu0 0
        %2048 = vmatprep.subr.bf16.mxu0 0
        %2049 = vmatpush1.bf16.msra.mxu0 0
        %2050 = vmatprep.mubr.bf16.mxu0 0
        %2051 = vmatmul.mubr.bf16.gmra.mrb[0].mxu0 %v2016
        %v2052 = vpop.f32.mrb[0].mxu0
        %v2053 = vadd.f32 %v2001, %v2052
        %v2054 = vpop.f32.mrb[0].mxu0
        %v2055 = vpop.f32.mrb[0].mxu0
        %v2056 = vpop.f32.mrb[0].mxu0
        %2057 = vdwg.mxu0
        %v2058 = vadd.f32 %v2053, %v1186
        %v2059 = vsel %vm1212, %v2058, 0.0
        %2060 = vadd.xlane.f32.xlu0 %v2059
        %v2061 = vpop.xlane.xlu0 %2060
        %v2062 = vrcp.pop 32.0
        %v2063 = vmul.f32 %v2061, %v2062
        %v2064 = vsub.f32 %v2058, %v2063
        %v2065 = vmul.f32 %v2064, %v2064
        %v2066 = vsel %vm1212, %v2065, 0.0
        %2067 = vadd.xlane.f32.xlu0 %v2066
        %v2068 = vpop.xlane.xlu0 %2067
        %v2069 = vmul.f32 %v2068, %v2062
        %v2070 = vadd.f32 %v2069, 1e-12
        %v2071 = vrsqrt.pop %v2070
        %v2072 = vmul.f32 %v2064, %v2071
        %v2073 = vld [vmem:[#allocation21] sm:$0x1]
        %v2075 = vlaneseq
        %v2076 = vshrl.u32 %v2075, 7
        %v2077 = vsub.s32 0, %v2076
        %v2078 = vrot.slane %v2073, %v2077
        %v2080 = vmul.f32 %v2072, %v2078
        %v2081 = vld [vmem:[#allocation22] sm:$0x1]
        %v2083 = vlaneseq
        %v2084 = vshrl.u32 %v2083, 7
        %v2085 = vsub.s32 0, %v2084
        %v2086 = vrot.slane %v2081, %v2085
        %v2088 = vadd.f32 %v2080, %v2086
        %2089 = vst.msk [vmem:[%s609] sm:$0xff] %vm1212, %v2088
        %s2090 = sand.u32 %s321, 1
        %s2091 = scalar_lea.sflag [#allocation6], %s2090
        %s2092 = sand.u32 %s321, 1
        %s2093 = smul.addr %s2092, 8
        %s2094 = scalar_lea.vmem [#allocation24], %s2093
        // Predicated region
        $region121: #{tpu_custom_call.1} parent=67 // pred_check
          %p2095 = pneg %p331
        $region122: #{tpu_custom_call.1} parent=67 // pred_check_branch
          %2097 = sbr.rel (%p2095) target = $region124
        $region123: #{tpu_custom_call.1} parent=67 // pred_region
          %s2099 = ssub.s32 128, 128
          %2100 = vsyncadd %s2091, %s2099
          %s2101 = sadd.s32 %s42, %s41
          %s2102 = smul.addr %s2101, 128
          %s2103 = scalar_lea.hbm %s12, %s2102
          %s2105 = sshll.u32 %s2094, 4
          %s2106 = int_to_ptr.vmem [resolvable:$true] %s2105
          %2108 = dma.vmem_to_hbm [thread:$0]  %s2106, 128, %s2103, %s2091
        $region124: #{tpu_custom_call.1} parent=67 // pred_fallthru
          _
      $region68: #{tpu_custom_call.1} parent=5 // pred_fallthru
        _
      %p2109 = scmp.le.s32.totalorder 2, %s32
      // Predicated region
      $region125: #{tpu_custom_call.1} parent=5 // pred_check
        %p2110 = pneg %p2109
      $region126: #{tpu_custom_call.1} parent=5 // pred_check_branch
        %2112 = sbr.rel (%p2110) target = $region128
      $region127: #{tpu_custom_call.1} parent=5 // pred_region
        %s2113 = ssub.s32 %s32, 2
        // Predicated region
        $region129: #{tpu_custom_call.1} parent=127 // pred_check
          %p2114 = pneg %p337
        $region130: #{tpu_custom_call.1} parent=127 // pred_check_branch
          %2116 = sbr.rel (%p2114) target = $region132
        $region131: #{tpu_custom_call.1} parent=127 // pred_region
          %s2117 = sand.u32 %s322, 1
          %s2118 = scalar_lea.sflag [#allocation6], %s2117
          %s2119 = sand.u32 %s322, 1
          %s2120 = smul.addr %s2119, 8
          %s2121 = scalar_lea.vmem [#allocation24], %s2120
          %2122 = dma.done %s2118, 128
        $region132: #{tpu_custom_call.1} parent=127 // pred_fallthru
          _
      $region128: #{tpu_custom_call.1} parent=5 // pred_fallthru
        _
    $region6: #{tpu_custom_call.1} parent=1 // loop_footer
      %s36 = sadd.s32 1, %s32
    $region7: #{tpu_custom_call.1} parent=1 // loop_footer_branch
      %31 = sbr.rel target = $region3
    $region8: #{tpu_custom_call.1} parent=1 // loop_exit
      _
    %2123 = vsyncpa [#allocation5], 1
    %s2124 = scalar_lea.sflag [#allocation5], 1
    %2125 = vsyncpa %s2124, 1
    %2126 = vsyncpa [#allocation8], 1
    %s2127 = scalar_lea.sflag [#allocation8], 1
    %2128 = vsyncpa %s2127, 1
    %2129 = vsyncpa [#allocation11], 1
    %2130 = vsyncpa [#allocation14], 1
    %2131 = vsyncpa [#allocation17], 1
    %2132 = vsyncpa [#allocation20], 1
    %2133 = vsyncpa [#allocation23], 1
    %2134 = vsyncpa [#allocation6], 1
    %s2135 = scalar_lea.sflag [#allocation6], 1
    %2136 = vsyncpa %s2135, 1

</llo_original>
